<compile_context>
chip_gen: v6e
topology: v6e:2x2x1
jax: 0.10.0
libtpu: 0.0.40
codegen_flags: <defaults>
</compile_context>

<pallas_src>
import functools

import numpy as np
import jax
import jax.numpy as jnp
from jax import lax
from jax.experimental import pallas as pl
from jax.experimental.pallas import tpu as pltpu  # noqa: F401  (TPU backend)


# --------------------------- in-kernel helpers ---------------------------
def _atan2(y, x):
    """atan2 from Mosaic-safe ops (abs/min/max/div/where/poly), |err| ~ 1e-5 rad."""
    ax = jnp.abs(x)
    ay = jnp.abs(y)
    mx = jnp.maximum(ax, ay)
    mn = jnp.minimum(ax, ay)
    z = mn / jnp.where(mx == 0.0, 1.0, mx)          # in [0, 1]
    s = z * z
    r = z * (0.99997726 + s * (-0.33262347 + s * (0.19354346
            + s * (-0.11643287 + s * (0.05265332 + s * (-0.01172120))))))
    r = jnp.where(ay > ax, 0.5 * np.pi - r, r)
    r = jnp.where(x < 0.0, np.pi - r, r)
    return jnp.where(y < 0.0, -r, r)


def _pae_kernel(x_ref, w1_ref, b1_ref, lnM_ref, al1_ref, be1_ref,
                w2_ref, b2_ref, dft_ref, sel_ref, fcp_ref, fcb_ref,
                expm_ref, args_ref, w3_ref, b3_ref, al2_ref, be2_ref,
                w4_ref, b4_ref,
                y_ref, latent_ref, sig_ref, prm_ref,
                *, E, T, eps):
    two_pi = 2.0 * np.pi

    def dot(a, b):
        return jnp.dot(a, b, preferred_element_type=jnp.float32)

    def ln_elu(h, al, be):
        # LN over the time axis of each channel via the block-diagonal mean
        # matrix lnM (rows/cols grouped per channel), then ELU(alpha=1).
        mean = dot(h, lnM_ref[...])
        c = h - mean
        var = dot(c * c, lnM_ref[...])
        g = c / jnp.sqrt(var + eps) * al + be
        return jnp.where(g > 0.0, g, jnp.exp(g) - 1.0)

    x = x_ref[...]                                            # (B, C*T)

    # ---- conv1 (Toeplitz matmul) + LN + ELU ----
    h = ln_elu(dot(x, w1_ref[...]) + b1_ref[...], al1_ref[...], be1_ref[...])

    # ---- conv2 -> latent ----
    lat = dot(h, w2_ref[...]) + b2_ref[...]                   # (B, E*T)
    latent_ref[...] = lat

    # ---- DFT (bins 1..T//2, cos|sin concatenated, block-diag per channel) ----
    dftv = dot(lat, dft_ref[...])                             # (B, E*2F)
    stats = dot(dftv * dftv, sel_ref[...])                    # (B, 2E): [psum | freq-weighted]
    psum = stats[:, 0:E]
    wsum = stats[:, E:2 * E]
    f = wsum / psum
    a = (2.0 / T) * jnp.sqrt(psum)

    # ---- per-channel FC (+ DC offset folded into the same matmul) ----
    v = dot(lat, fcp_ref[...]) + fcb_ref[...]                 # (B, 3E): [v0 | v1 | offset]
    v0 = v[:, 0:E]
    v1 = v[:, E:2 * E]
    off = v[:, 2 * E:3 * E]
    p = _atan2(v1, v0) / two_pi

    # packed lane-dense params output: [p | f | a | offset]
    prm_ref[:, 0:E] = p
    prm_ref[:, E:2 * E] = f
    prm_ref[:, 2 * E:3 * E] = a
    prm_ref[:, 3 * E:4 * E] = off

    # ---- periodic signal synthesis (broadcast (B,E) -> (B,E*T) via matmul) ----
    ex = expm_ref[...]
    sig = (dot(a, ex) * jnp.sin(two_pi * (dot(f, ex) * args_ref[...] + dot(p, ex)))
           + dot(off, ex))
    sig_ref[...] = sig

    # ---- deconv1 + LN + ELU, deconv2 ----
    h = ln_elu(dot(sig, w3_ref[...]) + b3_ref[...], al2_ref[...], be2_ref[...])
    y_ref[...] = dot(h, w4_ref[...]) + b4_ref[...]


# --------------------------- wrapper / pallas_call ---------------------------
def pae_forward(x, derived, cfg):
    B = x.shape[0]
    C, E, T = cfg["input_channels"], cfg["embedding_channels"], cfg["time_range"]
    x2 = x.reshape(B, C * T).astype(jnp.float32)

    out_shapes = (
        jax.ShapeDtypeStruct((B, C * T), jnp.float32),   # reconstruction
        jax.ShapeDtypeStruct((B, E * T), jnp.float32),   # latent
        jax.ShapeDtypeStruct((B, E * T), jnp.float32),   # signal
        jax.ShapeDtypeStruct((B, 4 * E), jnp.float32),   # packed [p|f|a|b]
    )
    kern = functools.partial(_pae_kernel, E=E, T=T, eps=1e-5)
    y2, lat2, sig2, prm = pl.pallas_call(kern, out_shape=out_shapes)(
        x2,
        derived["w1"], derived["b1"], derived["lnM"],
        derived["alpha1"], derived["beta1"],
        derived["w2"], derived["b2"],
        derived["dft"], derived["sel"], derived["fcp"], derived["fcb"],
        derived["expm"], derived["args"],
        derived["w3"], derived["b3"],
        derived["alpha2"], derived["beta2"],
        derived["w4"], derived["b4"],
    )
    y = y2.reshape(B, C, T)
    latent = lat2.reshape(B, E, T)
    signal = sig2.reshape(B, E, T)
    p = prm[:, 0:E].reshape(B, E, 1)
    f = prm[:, E:2 * E].reshape(B, E, 1)
    a = prm[:, 2 * E:3 * E].reshape(B, E, 1)
    b = prm[:, 3 * E:4 * E].reshape(B, E, 1)
    return y, latent, signal, [p, f, a, b]


# --------------------------- parameters & derived constants ---------------------------
def init_params(key, C, E, T):
    Ci = C // 3
    ks = jax.random.split(key, 14)

    def w(k, shape, scale=0.1):
        return (scale * jax.random.normal(k, shape)).astype(jnp.float32)

    return dict(
        conv1_w=w(ks[0], (Ci, C, T)), conv1_b=w(ks[1], (Ci,)),
        norm1_alpha=(1.0 + 0.1 * jax.random.normal(ks[2], (T,))).astype(jnp.float32),
        norm1_beta=w(ks[3], (T,)),
        conv2_w=w(ks[4], (E, Ci, T)), conv2_b=w(ks[5], (E,)),
        fc_w=w(ks[6], (E, 2, T)), fc_b=w(ks[7], (E, 2)),
        deconv1_w=w(ks[8], (Ci, E, T)), deconv1_b=w(ks[9], (Ci,)),
        denorm1_alpha=(1.0 + 0.1 * jax.random.normal(ks[10], (T,))).astype(jnp.float32),
        denorm1_beta=w(ks[11], (T,)),
        deconv2_w=w(ks[12], (C, Ci, T)), deconv2_b=w(ks[13], (C,)),
    )


def build_derived(params, cfg):
    """Precompute (host-side, numpy) the Toeplitz conv mats, LN mask, DFT bases,
    selector/broadcast matrices used by the fused kernel."""
    C, E, T = cfg["input_channels"], cfg["embedding_channels"], cfg["time_range"]
    window = cfg["window"]
    Ci = C // 3
    F = T // 2

    def npf(v):
        return np.asarray(v, dtype=np.float32)

    def toeplitz(wt):
        wt = npf(wt)
        O, Cin, K = wt.shape
        pad = (K - 1) // 2
        M = np.zeros((Cin * T, O * T), np.float32)
        for o in range(O):
            for c in range(Cin):
                for t_out in range(T):
                    for s in range(T):
                        k = s - t_out + pad
                        if 0 <= k < K:
                            M[c * T + s, o * T + t_out] = wt[o, c, k]
        return M

    def bias_tile(b):
        b = npf(b)
        O = b.shape[0]
        return np.repeat(b.reshape(O, 1), T, axis=1).reshape(1, O * T)

    def tile_tparam(v):
        return np.tile(npf(v).reshape(T), Ci).reshape(1, Ci * T)

    # LN mean operator: block-diagonal (per channel) average over time.
    lnM = np.kron(np.eye(Ci, dtype=np.float32),
                  np.full((T, T), 1.0 / T, dtype=np.float32))

    # DFT bases for bins k = 1..F, cos then sin, block-diagonal over E channels.
    t = np.arange(T, dtype=np.float64)
    k = np.arange(1, F + 1, dtype=np.float64)
    ang = 2.0 * np.pi * np.outer(t, k) / T
    dft_single = np.concatenate([np.cos(ang), np.sin(ang)], axis=1).astype(np.float32)
    dft_big = np.kron(np.eye(E, dtype=np.float32), dft_single)          # (E*T, E*2F)

    freqs = (np.fft.rfftfreq(T)[1:] * T / window).astype(np.float32)    # (F,)
    sel_psum = np.kron(np.eye(E, dtype=np.float32), np.ones((2 * F, 1), np.float32))
    sel_wsum = np.kron(np.eye(E, dtype=np.float32),
                       np.concatenate([freqs, freqs]).reshape(2 * F, 1).astype(np.float32))
    sel = np.concatenate([sel_psum, sel_wsum], axis=1)                  # (E*2F, 2E)

    # FC weights (block-diagonal) + DC-offset reduction merged: -> (B, [v0|v1|off]).
    fc_w = npf(params["fc_w"])
    fc_b = npf(params["fc_b"])
    fcp = np.zeros((E * T, 3 * E), np.float32)
    for e in range(E):
        fcp[e * T:(e + 1) * T, e] = fc_w[e, 0]
        fcp[e * T:(e + 1) * T, E + e] = fc_w[e, 1]
        fcp[e * T:(e + 1) * T, 2 * E + e] = 1.0 / T
    fcb = np.concatenate([fc_b[:, 0], fc_b[:, 1], np.zeros(E, np.float32)]).reshape(1, 3 * E)

    expm = np.kron(np.eye(E, dtype=np.float32), np.ones((1, T), np.float32))  # (E, E*T)
    args = np.linspace(-window / 2.0, window / 2.0, T, dtype=np.float32)
    args_tile = np.tile(args, E).reshape(1, E * T)

    d = dict(
        w1=toeplitz(params["conv1_w"]), b1=bias_tile(params["conv1_b"]),
        lnM=lnM,
        alpha1=tile_tparam(params["norm1_alpha"]), beta1=tile_tparam(params["norm1_beta"]),
        w2=toeplitz(params["conv2_w"]), b2=bias_tile(params["conv2_b"]),
        dft=dft_big, sel=sel, fcp=fcp, fcb=fcb,
        expm=expm, args=args_tile,
        w3=toeplitz(params["deconv1_w"]), b3=bias_tile(params["deconv1_b"]),
        alpha2=tile_tparam(params["denorm1_alpha"]), beta2=tile_tparam(params["denorm1_beta"]),
        w4=toeplitz(params["deconv2_w"]), b4=bias_tile(params["deconv2_b"]),
    )
    return {kk: jnp.asarray(vv, dtype=jnp.float32) for kk, vv in d.items()}


# --------------------------- pure-JAX reference (PyTorch semantics) ---------------------------
def _conv1d_ref(x, w, b):
    P = (w.shape[-1] - 1) // 2
    out = lax.conv_general_dilated(
        x, w, window_strides=(1,), padding=[(P, P)],
        dimension_numbers=("NCH", "OIH", "NCH"),
        precision=lax.Precision.HIGHEST)
    return out + b[None, :, None]


def _ln_ref(x, alpha, beta, eps=1e-5):
    mean = jnp.mean(x, axis=-1, keepdims=True)
    var = jnp.mean((x - mean) ** 2, axis=-1, keepdims=True)
    y = (x - mean) / jnp.sqrt(var + eps)
    return y * alpha.reshape(1, 1, -1) + beta.reshape(1, 1, -1)


def _elu_ref(x):
    return jnp.where(x > 0.0, x, jnp.exp(x) - 1.0)


def reference_forward(x, params, cfg):
    B = x.shape[0]
    C, E, T = cfg["input_channels"], cfg["embedding_channels"], cfg["time_range"]
    window = cfg["window"]
    two_pi = 2.0 * np.pi
    freqs = jnp.asarray(np.fft.rfftfreq(T)[1:] * T / window, dtype=jnp.float32)
    args = jnp.asarray(np.linspace(-window / 2.0, window / 2.0, T, dtype=np.float32))

    y = x.reshape(B, C, T)
    y = _conv1d_ref(y, params["conv1_w"], params["conv1_b"])
    y = _elu_ref(_ln_ref(y, params["norm1_alpha"], params["norm1_beta"]))
    y = _conv1d_ref(y, params["conv2_w"], params["conv2_b"])
    latent = y

    rfft = jnp.fft.rfft(y.astype(jnp.float32), axis=2)
    power = jnp.abs(rfft)[:, :, 1:] ** 2
    f = jnp.sum(freqs * power, axis=2) / jnp.sum(power, axis=2)
    a = 2.0 * jnp.sqrt(jnp.sum(power, axis=2)) / T
    b = jnp.real(rfft)[:, :, 0] / T

    v = jnp.einsum("bet,ejt->bej", y, params["fc_w"],
                   precision=lax.Precision.HIGHEST) + params["fc_b"][None]
    p = jnp.arctan2(v[:, :, 1], v[:, :, 0]) / two_pi

    p, f, a, b = p[..., None], f[..., None], a[..., None], b[..., None]
    sig = a * jnp.sin(two_pi * (f * args + p)) + b

    y = _conv1d_ref(sig, params["deconv1_w"], params["deconv1_b"])
    y = _elu_ref(_ln_ref(y, params["denorm1_alpha"], params["denorm1_beta"]))
    y = _conv1d_ref(y, params["deconv2_w"], params["deconv2_b"])
    return y, latent, sig, [p, f, a, b]


# ------------------------------------ main ------------------------------------
if __name__ == "__main__":
    cfg = dict(input_channels=6, embedding_channels=4, time_range=9, window=2.0)
    B = 2
    key = jax.random.PRNGKey(0)
    kx, kp = jax.random.split(key)
    x = jax.random.normal(
        kx, (B, cfg["input_channels"], cfg["time_range"]), dtype=jnp.float32)
    params = init_params(kp, cfg["input_channels"], cfg["embedding_channels"],
                         cfg["time_range"])
    derived = build_derived(params, cfg)

    fwd = jax.jit(lambda xx: pae_forward(xx, derived, cfg))
    outs = fwd(x)
    outs = jax.block_until_ready(outs)

    refs = reference_forward(x, params, cfg)
    y, latent, signal, plist = outs
    ry, rlat, rsig, rplist = refs
    np.testing.assert_allclose(np.asarray(latent), np.asarray(rlat), rtol=2e-2, atol=2e-2)
    np.testing.assert_allclose(np.asarray(signal), np.asarray(rsig), rtol=2e-2, atol=2e-2)
    np.testing.assert_allclose(np.asarray(y), np.asarray(ry), rtol=2e-2, atol=2e-2)
    for got, ref in zip(plist, rplist):
        np.testing.assert_allclose(np.asarray(got), np.asarray(ref), rtol=2e-2, atol=2e-2)

    print("KERNEL_OK")
</pallas_src>

<mosaic_0001>
module attributes {stable_mosaic.version = 11 : i64} {
  func.func @_pae_kernel(%arg0: memref<2x54xf32, #tpu.memory_space<vmem>>, %arg1: memref<54x18xf32, #tpu.memory_space<vmem>>, %arg2: memref<1x18xf32, #tpu.memory_space<vmem>>, %arg3: memref<18x18xf32, #tpu.memory_space<vmem>>, %arg4: memref<1x18xf32, #tpu.memory_space<vmem>>, %arg5: memref<1x18xf32, #tpu.memory_space<vmem>>, %arg6: memref<18x36xf32, #tpu.memory_space<vmem>>, %arg7: memref<1x36xf32, #tpu.memory_space<vmem>>, %arg8: memref<36x32xf32, #tpu.memory_space<vmem>>, %arg9: memref<32x8xf32, #tpu.memory_space<vmem>>, %arg10: memref<36x12xf32, #tpu.memory_space<vmem>>, %arg11: memref<1x12xf32, #tpu.memory_space<vmem>>, %arg12: memref<4x36xf32, #tpu.memory_space<vmem>>, %arg13: memref<1x36xf32, #tpu.memory_space<vmem>>, %arg14: memref<36x18xf32, #tpu.memory_space<vmem>>, %arg15: memref<1x18xf32, #tpu.memory_space<vmem>>, %arg16: memref<1x18xf32, #tpu.memory_space<vmem>>, %arg17: memref<1x18xf32, #tpu.memory_space<vmem>>, %arg18: memref<18x54xf32, #tpu.memory_space<vmem>>, %arg19: memref<1x54xf32, #tpu.memory_space<vmem>>, %arg20: memref<2x54xf32, #tpu.memory_space<vmem>>, %arg21: memref<2x36xf32, #tpu.memory_space<vmem>>, %arg22: memref<2x36xf32, #tpu.memory_space<vmem>>, %arg23: memref<2x16xf32, #tpu.memory_space<vmem>>) attributes {dimension_semantics = [], scalar_prefetch = 0 : i64, scratch_operands = 0 : i64, tpu.core_type = #tpu.core_type<tc>} {
    %c0 = arith.constant 0 : index
    %c0_0 = arith.constant 0 : index
    %0 = vector.load %arg0[%c0, %c0_0] : memref<2x54xf32, #tpu.memory_space<vmem>>, vector<2x54xf32>
    %c0_1 = arith.constant 0 : index
    %c0_2 = arith.constant 0 : index
    %1 = vector.load %arg1[%c0_1, %c0_2] : memref<54x18xf32, #tpu.memory_space<vmem>>, vector<54x18xf32>
    %cst = arith.constant dense<0.000000e+00> : vector<2x18xf32>
    %2 = tpu.matmul %0, %1, %cst {dimension_numbers = #tpu.dot_dimension_numbers<[1], [0], [0], [1], [0, 0, 1, 1], [], []>} : vector<2x54xf32>, vector<54x18xf32>, vector<2x18xf32> -> vector<2x18xf32>
    %c0_3 = arith.constant 0 : index
    %c0_4 = arith.constant 0 : index
    %3 = vector.load %arg2[%c0_3, %c0_4] : memref<1x18xf32, #tpu.memory_space<vmem>>, vector<1x18xf32>
    %4 = vector.broadcast %3 : vector<1x18xf32> to vector<2x18xf32>
    %5 = arith.addf %2, %4 : vector<2x18xf32>
    %c0_5 = arith.constant 0 : index
    %c0_6 = arith.constant 0 : index
    %6 = vector.load %arg4[%c0_5, %c0_6] : memref<1x18xf32, #tpu.memory_space<vmem>>, vector<1x18xf32>
    %c0_7 = arith.constant 0 : index
    %c0_8 = arith.constant 0 : index
    %7 = vector.load %arg5[%c0_7, %c0_8] : memref<1x18xf32, #tpu.memory_space<vmem>>, vector<1x18xf32>
    %c0_9 = arith.constant 0 : index
    %c0_10 = arith.constant 0 : index
    %8 = vector.load %arg3[%c0_9, %c0_10] : memref<18x18xf32, #tpu.memory_space<vmem>>, vector<18x18xf32>
    %cst_11 = arith.constant dense<0.000000e+00> : vector<2x18xf32>
    %9 = tpu.matmul %5, %8, %cst_11 {dimension_numbers = #tpu.dot_dimension_numbers<[1], [0], [0], [1], [0, 0, 1, 1], [], []>} : vector<2x18xf32>, vector<18x18xf32>, vector<2x18xf32> -> vector<2x18xf32>
    %10 = arith.subf %5, %9 : vector<2x18xf32>
    %11 = arith.mulf %10, %10 : vector<2x18xf32>
    %c0_12 = arith.constant 0 : index
    %c0_13 = arith.constant 0 : index
    %12 = vector.load %arg3[%c0_12, %c0_13] : memref<18x18xf32, #tpu.memory_space<vmem>>, vector<18x18xf32>
    %cst_14 = arith.constant dense<0.000000e+00> : vector<2x18xf32>
    %13 = tpu.matmul %11, %12, %cst_14 {dimension_numbers = #tpu.dot_dimension_numbers<[1], [0], [0], [1], [0, 0, 1, 1], [], []>} : vector<2x18xf32>, vector<18x18xf32>, vector<2x18xf32> -> vector<2x18xf32>
    %cst_15 = arith.constant 9.99999974E-6 : f32
    %14 = vector.broadcast %cst_15 : f32 to vector<2x18xf32>
    %15 = arith.addf %13, %14 : vector<2x18xf32>
    %16 = math.sqrt %15 : vector<2x18xf32>
    %17 = arith.divf %10, %16 : vector<2x18xf32>
    %18 = vector.broadcast %6 : vector<1x18xf32> to vector<2x18xf32>
    %19 = arith.mulf %17, %18 : vector<2x18xf32>
    %20 = vector.broadcast %7 : vector<1x18xf32> to vector<2x18xf32>
    %21 = arith.addf %19, %20 : vector<2x18xf32>
    %cst_16 = arith.constant 0.000000e+00 : f32
    %22 = vector.broadcast %cst_16 : f32 to vector<2x18xf32>
    %23 = arith.cmpf ogt, %21, %22 : vector<2x18xf32>
    %24 = math.exp %21 : vector<2x18xf32>
    %cst_17 = arith.constant 1.000000e+00 : f32
    %25 = vector.broadcast %cst_17 : f32 to vector<2x18xf32>
    %26 = arith.subf %24, %25 : vector<2x18xf32>
    %27 = arith.select %23, %21, %26 : vector<2x18xi1>, vector<2x18xf32>
    %c0_18 = arith.constant 0 : index
    %c0_19 = arith.constant 0 : index
    %28 = vector.load %arg6[%c0_18, %c0_19] : memref<18x36xf32, #tpu.memory_space<vmem>>, vector<18x36xf32>
    %cst_20 = arith.constant dense<0.000000e+00> : vector<2x36xf32>
    %29 = tpu.matmul %27, %28, %cst_20 {dimension_numbers = #tpu.dot_dimension_numbers<[1], [0], [0], [1], [0, 0, 1, 1], [], []>} : vector<2x18xf32>, vector<18x36xf32>, vector<2x36xf32> -> vector<2x36xf32>
    %c0_21 = arith.constant 0 : index
    %c0_22 = arith.constant 0 : index
    %30 = vector.load %arg7[%c0_21, %c0_22] : memref<1x36xf32, #tpu.memory_space<vmem>>, vector<1x36xf32>
    %31 = vector.broadcast %30 : vector<1x36xf32> to vector<2x36xf32>
    %32 = arith.addf %29, %31 : vector<2x36xf32>
    %c0_23 = arith.constant 0 : index
    %c0_24 = arith.constant 0 : index
    %33 = vector.load %arg21[%c0_23, %c0_24] : memref<2x36xf32, #tpu.memory_space<vmem>>, vector<2x36xf32>
    tpu.vector_store %arg21[%c0_23, %c0_24], %32 {strides = array<i32>} : memref<2x36xf32, #tpu.memory_space<vmem>>, vector<2x36xf32>,
    %c0_25 = arith.constant 0 : index
    %c0_26 = arith.constant 0 : index
    %34 = vector.load %arg8[%c0_25, %c0_26] : memref<36x32xf32, #tpu.memory_space<vmem>>, vector<36x32xf32>
    %cst_27 = arith.constant dense<0.000000e+00> : vector<2x32xf32>
    %35 = tpu.matmul %32, %34, %cst_27 {dimension_numbers = #tpu.dot_dimension_numbers<[1], [0], [0], [1], [0, 0, 1, 1], [], []>} : vector<2x36xf32>, vector<36x32xf32>, vector<2x32xf32> -> vector<2x32xf32>
    %36 = arith.mulf %35, %35 : vector<2x32xf32>
    %c0_28 = arith.constant 0 : index
    %c0_29 = arith.constant 0 : index
    %37 = vector.load %arg9[%c0_28, %c0_29] : memref<32x8xf32, #tpu.memory_space<vmem>>, vector<32x8xf32>
    %cst_30 = arith.constant dense<0.000000e+00> : vector<2x8xf32>
    %38 = tpu.matmul %36, %37, %cst_30 {dimension_numbers = #tpu.dot_dimension_numbers<[1], [0], [0], [1], [0, 0, 1, 1], [], []>} : vector<2x32xf32>, vector<32x8xf32>, vector<2x8xf32> -> vector<2x8xf32>
    %39 = vector.extract_strided_slice %38 {offsets = [0, 0], sizes = [2, 4], strides = [1, 1]} : vector<2x8xf32> to vector<2x4xf32>
    %40 = vector.extract_strided_slice %38 {offsets = [0, 4], sizes = [2, 4], strides = [1, 1]} : vector<2x8xf32> to vector<2x4xf32>
    %41 = arith.divf %40, %39 : vector<2x4xf32>
    %42 = math.sqrt %39 : vector<2x4xf32>
    %cst_31 = arith.constant 0.222222224 : f32
    %43 = vector.broadcast %cst_31 : f32 to vector<2x4xf32>
    %44 = arith.mulf %43, %42 : vector<2x4xf32>
    %c0_32 = arith.constant 0 : index
    %c0_33 = arith.constant 0 : index
    %45 = vector.load %arg10[%c0_32, %c0_33] : memref<36x12xf32, #tpu.memory_space<vmem>>, vector<36x12xf32>
    %cst_34 = arith.constant dense<0.000000e+00> : vector<2x12xf32>
    %46 = tpu.matmul %32, %45, %cst_34 {dimension_numbers = #tpu.dot_dimension_numbers<[1], [0], [0], [1], [0, 0, 1, 1], [], []>} : vector<2x36xf32>, vector<36x12xf32>, vector<2x12xf32> -> vector<2x12xf32>
    %c0_35 = arith.constant 0 : index
    %c0_36 = arith.constant 0 : index
    %47 = vector.load %arg11[%c0_35, %c0_36] : memref<1x12xf32, #tpu.memory_space<vmem>>, vector<1x12xf32>
    %48 = vector.broadcast %47 : vector<1x12xf32> to vector<2x12xf32>
    %49 = arith.addf %46, %48 : vector<2x12xf32>
    %50 = vector.extract_strided_slice %49 {offsets = [0, 0], sizes = [2, 4], strides = [1, 1]} : vector<2x12xf32> to vector<2x4xf32>
    %51 = vector.extract_strided_slice %49 {offsets = [0, 4], sizes = [2, 4], strides = [1, 1]} : vector<2x12xf32> to vector<2x4xf32>
    %52 = vector.extract_strided_slice %49 {offsets = [0, 8], sizes = [2, 4], strides = [1, 1]} : vector<2x12xf32> to vector<2x4xf32>
    %53 = math.absf %50 : vector<2x4xf32>
    %54 = math.absf %51 : vector<2x4xf32>
    %55 = arith.maximumf %53, %54 : vector<2x4xf32>
    %56 = arith.minimumf %53, %54 : vector<2x4xf32>
    %cst_37 = arith.constant 0.000000e+00 : f32
    %57 = vector.broadcast %cst_37 : f32 to vector<2x4xf32>
    %58 = arith.cmpf oeq, %55, %57 : vector<2x4xf32>
    %cst_38 = arith.constant 1.000000e+00 : f32
    %59 = vector.broadcast %cst_38 : f32 to vector<2x4xf32>
    %60 = arith.select %58, %59, %55 : vector<2x4xi1>, vector<2x4xf32>
    %61 = arith.divf %56, %60 : vector<2x4xf32>
    %62 = arith.mulf %61, %61 : vector<2x4xf32>
    %cst_39 = arith.constant -1.172120e-02 : f32
    %63 = vector.broadcast %cst_39 : f32 to vector<2x4xf32>
    %64 = arith.mulf %62, %63 : vector<2x4xf32>
    %cst_40 = arith.constant 0.0526533201 : f32
    %65 = vector.broadcast %cst_40 : f32 to vector<2x4xf32>
    %66 = arith.addf %65, %64 : vector<2x4xf32>
    %67 = arith.mulf %62, %66 : vector<2x4xf32>
    %cst_41 = arith.constant -0.116432868 : f32
    %68 = vector.broadcast %cst_41 : f32 to vector<2x4xf32>
    %69 = arith.addf %68, %67 : vector<2x4xf32>
    %70 = arith.mulf %62, %69 : vector<2x4xf32>
    %cst_42 = arith.constant 0.193543464 : f32
    %71 = vector.broadcast %cst_42 : f32 to vector<2x4xf32>
    %72 = arith.addf %71, %70 : vector<2x4xf32>
    %73 = arith.mulf %62, %72 : vector<2x4xf32>
    %cst_43 = arith.constant -0.332623482 : f32
    %74 = vector.broadcast %cst_43 : f32 to vector<2x4xf32>
    %75 = arith.addf %74, %73 : vector<2x4xf32>
    %76 = arith.mulf %62, %75 : vector<2x4xf32>
    %cst_44 = arith.constant 0.999977231 : f32
    %77 = vector.broadcast %cst_44 : f32 to vector<2x4xf32>
    %78 = arith.addf %77, %76 : vector<2x4xf32>
    %79 = arith.mulf %61, %78 : vector<2x4xf32>
    %80 = arith.cmpf ogt, %54, %53 : vector<2x4xf32>
    %cst_45 = arith.constant 1.57079637 : f32
    %81 = vector.broadcast %cst_45 : f32 to vector<2x4xf32>
    %82 = arith.subf %81, %79 : vector<2x4xf32>
    %83 = arith.select %80, %82, %79 : vector<2x4xi1>, vector<2x4xf32>
    %cst_46 = arith.constant 0.000000e+00 : f32
    %84 = vector.broadcast %cst_46 : f32 to vector<2x4xf32>
    %85 = arith.cmpf olt, %50, %84 : vector<2x4xf32>
    %cst_47 = arith.constant 3.14159274 : f32
    %86 = vector.broadcast %cst_47 : f32 to vector<2x4xf32>
    %87 = arith.subf %86, %83 : vector<2x4xf32>
    %88 = arith.select %85, %87, %83 : vector<2x4xi1>, vector<2x4xf32>
    %cst_48 = arith.constant 0.000000e+00 : f32
    %89 = vector.broadcast %cst_48 : f32 to vector<2x4xf32>
    %90 = arith.cmpf olt, %51, %89 : vector<2x4xf32>
    %cst_49 = arith.constant 0.000000e+00 : f32
    %91 = vector.broadcast %cst_49 : f32 to vector<2x4xf32>
    %92 = arith.subf %91, %88 : vector<2x4xf32>
    %93 = arith.select %90, %92, %88 : vector<2x4xi1>, vector<2x4xf32>
    %cst_50 = arith.constant 6.28318548 : f32
    %94 = vector.broadcast %cst_50 : f32 to vector<2x4xf32>
    %95 = arith.divf %93, %94 : vector<2x4xf32>
    %c0_51 = arith.constant 0 : index
    %c0_52 = arith.constant 0 : index
    %96 = vector.load %arg23[%c0_51, %c0_52] : memref<2x16xf32, #tpu.memory_space<vmem>>, vector<2x4xf32>
    tpu.vector_store %arg23[%c0_51, %c0_52], %95 {strides = array<i32>} : memref<2x16xf32, #tpu.memory_space<vmem>>, vector<2x4xf32>,
    %c0_53 = arith.constant 0 : index
    %c4 = arith.constant 4 : index
    %97 = vector.load %arg23[%c0_53, %c4] : memref<2x16xf32, #tpu.memory_space<vmem>>, vector<2x4xf32>
    tpu.vector_store %arg23[%c0_53, %c4], %41 {strides = array<i32>} : memref<2x16xf32, #tpu.memory_space<vmem>>, vector<2x4xf32>,
    %c0_54 = arith.constant 0 : index
    %c8 = arith.constant 8 : index
    %98 = vector.load %arg23[%c0_54, %c8] : memref<2x16xf32, #tpu.memory_space<vmem>>, vector<2x4xf32>
    tpu.vector_store %arg23[%c0_54, %c8], %44 {strides = array<i32>} : memref<2x16xf32, #tpu.memory_space<vmem>>, vector<2x4xf32>,
    %c0_55 = arith.constant 0 : index
    %c12 = arith.constant 12 : index
    %99 = vector.load %arg23[%c0_55, %c12] : memref<2x16xf32, #tpu.memory_space<vmem>>, vector<2x4xf32>
    tpu.vector_store %arg23[%c0_55, %c12], %52 {strides = array<i32>} : memref<2x16xf32, #tpu.memory_space<vmem>>, vector<2x4xf32>,
    %c0_56 = arith.constant 0 : index
    %c0_57 = arith.constant 0 : index
    %100 = vector.load %arg12[%c0_56, %c0_57] : memref<4x36xf32, #tpu.memory_space<vmem>>, vector<4x36xf32>
    %cst_58 = arith.constant dense<0.000000e+00> : vector<2x36xf32>
    %101 = tpu.matmul %44, %100, %cst_58 {dimension_numbers = #tpu.dot_dimension_numbers<[1], [0], [0], [1], [0, 0, 1, 1], [], []>} : vector<2x4xf32>, vector<4x36xf32>, vector<2x36xf32> -> vector<2x36xf32>
    %cst_59 = arith.constant dense<0.000000e+00> : vector<2x36xf32>
    %102 = tpu.matmul %41, %100, %cst_59 {dimension_numbers = #tpu.dot_dimension_numbers<[1], [0], [0], [1], [0, 0, 1, 1], [], []>} : vector<2x4xf32>, vector<4x36xf32>, vector<2x36xf32> -> vector<2x36xf32>
    %c0_60 = arith.constant 0 : index
    %c0_61 = arith.constant 0 : index
    %103 = vector.load %arg13[%c0_60, %c0_61] : memref<1x36xf32, #tpu.memory_space<vmem>>, vector<1x36xf32>
    %104 = vector.broadcast %103 : vector<1x36xf32> to vector<2x36xf32>
    %105 = arith.mulf %102, %104 : vector<2x36xf32>
    %cst_62 = arith.constant dense<0.000000e+00> : vector<2x36xf32>
    %106 = tpu.matmul %95, %100, %cst_62 {dimension_numbers = #tpu.dot_dimension_numbers<[1], [0], [0], [1], [0, 0, 1, 1], [], []>} : vector<2x4xf32>, vector<4x36xf32>, vector<2x36xf32> -> vector<2x36xf32>
    %107 = arith.addf %105, %106 : vector<2x36xf32>
    %cst_63 = arith.constant 6.28318548 : f32
    %108 = vector.broadcast %cst_63 : f32 to vector<2x36xf32>
    %109 = arith.mulf %108, %107 : vector<2x36xf32>
    %110 = math.sin %109 : vector<2x36xf32>
    %111 = arith.mulf %101, %110 : vector<2x36xf32>
    %cst_64 = arith.constant dense<0.000000e+00> : vector<2x36xf32>
    %112 = tpu.matmul %52, %100, %cst_64 {dimension_numbers = #tpu.dot_dimension_numbers<[1], [0], [0], [1], [0, 0, 1, 1], [], []>} : vector<2x4xf32>, vector<4x36xf32>, vector<2x36xf32> -> vector<2x36xf32>
    %113 = arith.addf %111, %112 : vector<2x36xf32>
    %c0_65 = arith.constant 0 : index
    %c0_66 = arith.constant 0 : index
    %114 = vector.load %arg22[%c0_65, %c0_66] : memref<2x36xf32, #tpu.memory_space<vmem>>, vector<2x36xf32>
    tpu.vector_store %arg22[%c0_65, %c0_66], %113 {strides = array<i32>} : memref<2x36xf32, #tpu.memory_space<vmem>>, vector<2x36xf32>,
    %c0_67 = arith.constant 0 : index
    %c0_68 = arith.constant 0 : index
    %115 = vector.load %arg14[%c0_67, %c0_68] : memref<36x18xf32, #tpu.memory_space<vmem>>, vector<36x18xf32>
    %cst_69 = arith.constant dense<0.000000e+00> : vector<2x18xf32>
    %116 = tpu.matmul %113, %115, %cst_69 {dimension_numbers = #tpu.dot_dimension_numbers<[1], [0], [0], [1], [0, 0, 1, 1], [], []>} : vector<2x36xf32>, vector<36x18xf32>, vector<2x18xf32> -> vector<2x18xf32>
    %c0_70 = arith.constant 0 : index
    %c0_71 = arith.constant 0 : index
    %117 = vector.load %arg15[%c0_70, %c0_71] : memref<1x18xf32, #tpu.memory_space<vmem>>, vector<1x18xf32>
    %118 = vector.broadcast %117 : vector<1x18xf32> to vector<2x18xf32>
    %119 = arith.addf %116, %118 : vector<2x18xf32>
    %c0_72 = arith.constant 0 : index
    %c0_73 = arith.constant 0 : index
    %120 = vector.load %arg16[%c0_72, %c0_73] : memref<1x18xf32, #tpu.memory_space<vmem>>, vector<1x18xf32>
    %c0_74 = arith.constant 0 : index
    %c0_75 = arith.constant 0 : index
    %121 = vector.load %arg17[%c0_74, %c0_75] : memref<1x18xf32, #tpu.memory_space<vmem>>, vector<1x18xf32>
    %c0_76 = arith.constant 0 : index
    %c0_77 = arith.constant 0 : index
    %122 = vector.load %arg3[%c0_76, %c0_77] : memref<18x18xf32, #tpu.memory_space<vmem>>, vector<18x18xf32>
    %cst_78 = arith.constant dense<0.000000e+00> : vector<2x18xf32>
    %123 = tpu.matmul %119, %122, %cst_78 {dimension_numbers = #tpu.dot_dimension_numbers<[1], [0], [0], [1], [0, 0, 1, 1], [], []>} : vector<2x18xf32>, vector<18x18xf32>, vector<2x18xf32> -> vector<2x18xf32>
    %124 = arith.subf %119, %123 : vector<2x18xf32>
    %125 = arith.mulf %124, %124 : vector<2x18xf32>
    %c0_79 = arith.constant 0 : index
    %c0_80 = arith.constant 0 : index
    %126 = vector.load %arg3[%c0_79, %c0_80] : memref<18x18xf32, #tpu.memory_space<vmem>>, vector<18x18xf32>
    %cst_81 = arith.constant dense<0.000000e+00> : vector<2x18xf32>
    %127 = tpu.matmul %125, %126, %cst_81 {dimension_numbers = #tpu.dot_dimension_numbers<[1], [0], [0], [1], [0, 0, 1, 1], [], []>} : vector<2x18xf32>, vector<18x18xf32>, vector<2x18xf32> -> vector<2x18xf32>
    %cst_82 = arith.constant 9.99999974E-6 : f32
    %128 = vector.broadcast %cst_82 : f32 to vector<2x18xf32>
    %129 = arith.addf %127, %128 : vector<2x18xf32>
    %130 = math.sqrt %129 : vector<2x18xf32>
    %131 = arith.divf %124, %130 : vector<2x18xf32>
    %132 = vector.broadcast %120 : vector<1x18xf32> to vector<2x18xf32>
    %133 = arith.mulf %131, %132 : vector<2x18xf32>
    %134 = vector.broadcast %121 : vector<1x18xf32> to vector<2x18xf32>
    %135 = arith.addf %133, %134 : vector<2x18xf32>
    %cst_83 = arith.constant 0.000000e+00 : f32
    %136 = vector.broadcast %cst_83 : f32 to vector<2x18xf32>
    %137 = arith.cmpf ogt, %135, %136 : vector<2x18xf32>
    %138 = math.exp %135 : vector<2x18xf32>
    %cst_84 = arith.constant 1.000000e+00 : f32
    %139 = vector.broadcast %cst_84 : f32 to vector<2x18xf32>
    %140 = arith.subf %138, %139 : vector<2x18xf32>
    %141 = arith.select %137, %135, %140 : vector<2x18xi1>, vector<2x18xf32>
    %c0_85 = arith.constant 0 : index
    %c0_86 = arith.constant 0 : index
    %142 = vector.load %arg18[%c0_85, %c0_86] : memref<18x54xf32, #tpu.memory_space<vmem>>, vector<18x54xf32>
    %cst_87 = arith.constant dense<0.000000e+00> : vector<2x54xf32>
    %143 = tpu.matmul %141, %142, %cst_87 {dimension_numbers = #tpu.dot_dimension_numbers<[1], [0], [0], [1], [0, 0, 1, 1], [], []>} : vector<2x18xf32>, vector<18x54xf32>, vector<2x54xf32> -> vector<2x54xf32>
    %c0_88 = arith.constant 0 : index
    %c0_89 = arith.constant 0 : index
    %144 = vector.load %arg19[%c0_88, %c0_89] : memref<1x54xf32, #tpu.memory_space<vmem>>, vector<1x54xf32>
    %145 = vector.broadcast %144 : vector<1x54xf32> to vector<2x54xf32>
    %146 = arith.addf %143, %145 : vector<2x54xf32>
    %c0_90 = arith.constant 0 : index
    %c0_91 = arith.constant 0 : index
    %147 = vector.load %arg20[%c0_90, %c0_91] : memref<2x54xf32, #tpu.memory_space<vmem>>, vector<2x54xf32>
    tpu.vector_store %arg20[%c0_90, %c0_91], %146 {strides = array<i32>} : memref<2x54xf32, #tpu.memory_space<vmem>>, vector<2x54xf32>,
    return
  }
}

</mosaic_0001>

<llo_original>
// kernel: _lambda_.1
$region0: #{_lambda_.1}
  #allocation0 [shape = 'u32[]', space=smem, size = 0x4, offset = 0x4, fixed_abs, tag = 'smem constant byte address 0x4 - core index']
  #allocation1 [shape = 'u32[144,128]{1,0:T(1,128)}', space=vmem, size = 0x12000, scoped, tag = 'internal scratch']
  %s0 = inlined_call_operand.vmem [shape: f32[2,54], index: 0, kind: input, shape index: {}]
  %s1 = inlined_call_operand.vmem [shape: f32[54,18], index: 1, kind: input, shape index: {}]
  %s2 = inlined_call_operand.hbm [shape: f32[1,18], index: 2, kind: input, shape index: {}]
  %s3 = inlined_call_operand.vmem [shape: f32[18,18], index: 3, kind: input, shape index: {}]
  %s4 = inlined_call_operand.hbm [shape: f32[1,18], index: 4, kind: input, shape index: {}]
  %s5 = inlined_call_operand.hbm [shape: f32[1,18], index: 5, kind: input, shape index: {}]
  %s6 = inlined_call_operand.hbm [shape: f32[18,36], index: 6, kind: input, shape index: {}]
  %s7 = inlined_call_operand.hbm [shape: f32[1,36], index: 7, kind: input, shape index: {}]
  %s8 = inlined_call_operand.hbm [shape: f32[36,32], index: 8, kind: input, shape index: {}]
  %s9 = inlined_call_operand.hbm [shape: f32[32,8], index: 9, kind: input, shape index: {}]
  %s10 = inlined_call_operand.hbm [shape: f32[36,12], index: 10, kind: input, shape index: {}]
  %s11 = inlined_call_operand.hbm [shape: f32[1,12], index: 11, kind: input, shape index: {}]
  %s12 = inlined_call_operand.hbm [shape: f32[4,36], index: 12, kind: input, shape index: {}]
  %s13 = inlined_call_operand.hbm [shape: f32[1,36], index: 13, kind: input, shape index: {}]
  %s14 = inlined_call_operand.hbm [shape: f32[36,18], index: 14, kind: input, shape index: {}]
  %s15 = inlined_call_operand.hbm [shape: f32[1,18], index: 15, kind: input, shape index: {}]
  %s16 = inlined_call_operand.hbm [shape: f32[1,18], index: 16, kind: input, shape index: {}]
  %s17 = inlined_call_operand.hbm [shape: f32[1,18], index: 17, kind: input, shape index: {}]
  %s18 = inlined_call_operand.hbm [shape: f32[18,54], index: 18, kind: input, shape index: {}]
  %s19 = inlined_call_operand.hbm [shape: f32[1,54], index: 19, kind: input, shape index: {}]
  %s20 = inlined_call_operand.vmem [shape: f32[2,54], index: 20, kind: output, shape index: {0}]
  %s21 = inlined_call_operand.vmem [shape: f32[2,36], index: 21, kind: output, shape index: {1}]
  %s22 = inlined_call_operand.vmem [shape: f32[2,36], index: 22, kind: output, shape index: {2}]
  %s23 = inlined_call_operand.vmem [shape: f32[2,16], index: 23, kind: output, shape index: {3}]
  %24 = xla_tuple %s20, %s21, %s22, %s23
  %s25 = sld [smem:[#allocation0]]
  $region182: #{_lambda_.1} parent=0
    _
  %s27 = ssub.s32 1, %s25
  %s28 = scalar_select 0, %s27, %s25
  $region1: #{_lambda_.1} parent=0
    #allocation2 [shape = 'u8[512]{0}', space=vmem, size = 0x400, scoped, tag = 'input window, operand 2, single buffered']
    #allocation3 [shape = 's32[1]{0}', space=sflag, size = 0x4, scoped, tag = 'scoped memory for _lambda_.1']
    #allocation4 [shape = 'u8[512]{0}', space=vmem, size = 0x400, scoped, tag = 'input window, operand 4, single buffered']
    #allocation5 [shape = 's32[1]{0}', space=sflag, size = 0x4, scoped, tag = 'scoped memory for _lambda_.1']
    #allocation6 [shape = 'u8[512]{0}', space=vmem, size = 0x400, scoped, tag = 'input window, operand 5, single buffered']
    #allocation7 [shape = 'u8[12288]{0}', space=vmem, size = 0x3000, scoped, tag = 'input window, operand 6, single buffered']
    #allocation8 [shape = 's32[1]{0}', space=sflag, size = 0x4, scoped, tag = 'scoped memory for _lambda_.1']
    #allocation9 [shape = 'u8[512]{0}', space=vmem, size = 0x400, scoped, tag = 'input window, operand 7, single buffered']
    #allocation10 [shape = 'u8[20480]{0}', space=vmem, size = 0x5000, scoped, tag = 'input window, operand 8, single buffered']
    #allocation11 [shape = 's32[1]{0}', space=sflag, size = 0x4, scoped, tag = 'scoped memory for _lambda_.1']
    #allocation12 [shape = 'u8[16384]{0}', space=vmem, size = 0x4000, scoped, tag = 'input window, operand 9, single buffered']
    #allocation13 [shape = 'u8[20480]{0}', space=vmem, size = 0x5000, scoped, tag = 'input window, operand 10, single buffered']
    #allocation14 [shape = 's32[1]{0}', space=sflag, size = 0x4, scoped, tag = 'scoped memory for _lambda_.1']
    #allocation15 [shape = 'u8[512]{0}', space=vmem, size = 0x400, scoped, tag = 'input window, operand 11, single buffered']
    #allocation16 [shape = 'u8[2048]{0}', space=vmem, size = 0x800, scoped, tag = 'input window, operand 12, single buffered']
    #allocation17 [shape = 's32[1]{0}', space=sflag, size = 0x4, scoped, tag = 'scoped memory for _lambda_.1']
    #allocation18 [shape = 'u8[512]{0}', space=vmem, size = 0x400, scoped, tag = 'input window, operand 13, single buffered']
    #allocation19 [shape = 'u8[20480]{0}', space=vmem, size = 0x5000, scoped, tag = 'input window, operand 14, single buffered']
    #allocation20 [shape = 's32[1]{0}', space=sflag, size = 0x4, scoped, tag = 'scoped memory for _lambda_.1']
    #allocation21 [shape = 'u8[512]{0}', space=vmem, size = 0x400, scoped, tag = 'input window, operand 15, single buffered']
    #allocation22 [shape = 'u8[512]{0}', space=vmem, size = 0x400, scoped, tag = 'input window, operand 16, single buffered']
    #allocation23 [shape = 's32[1]{0}', space=sflag, size = 0x4, scoped, tag = 'scoped memory for _lambda_.1']
    #allocation24 [shape = 'u8[512]{0}', space=vmem, size = 0x400, scoped, tag = 'input window, operand 17, single buffered']
    #allocation25 [shape = 'u8[12288]{0}', space=vmem, size = 0x3000, scoped, tag = 'input window, operand 18, single buffered']
    #allocation26 [shape = 's32[1]{0}', space=sflag, size = 0x4, scoped, tag = 'scoped memory for _lambda_.1']
    #allocation27 [shape = 'u8[512]{0}', space=vmem, size = 0x400, scoped, tag = 'input window, operand 19, single buffered']
    %29 = vsyncpa [#allocation3], 0
    %30 = vsyncpa [#allocation5], 0
    %31 = vsyncpa [#allocation8], 0
    %32 = vsyncpa [#allocation11], 0
    %33 = vsyncpa [#allocation14], 0
    %34 = vsyncpa [#allocation17], 0
    %35 = vsyncpa [#allocation20], 0
    %36 = vsyncpa [#allocation23], 0
    %37 = vsyncpa [#allocation26], 0
    // Predicated region
    $region2: #{_lambda_.1} parent=1 // pred_check
      _
    $region3: #{_lambda_.1} parent=1 // pred_check_branch
      %39 = sbr.rel (0) target = $region5
    $region4: #{_lambda_.1} parent=1 // pred_region
      _
    $region5: #{_lambda_.1} parent=1 // pred_fallthru
      _
    // Predicated region
    $region6: #{_lambda_.1} parent=1 // pred_check
      _
    $region7: #{_lambda_.1} parent=1 // pred_check_branch
      %41 = sbr.rel (0) target = $region9
    $region8: #{_lambda_.1} parent=1 // pred_region
      _
    $region9: #{_lambda_.1} parent=1 // pred_fallthru
      _
    // Predicated region
    $region10: #{_lambda_.1} parent=1 // pred_check
      _
    $region11: #{_lambda_.1} parent=1 // pred_check_branch
      %43 = sbr.rel (0) target = $region13
    $region12: #{_lambda_.1} parent=1 // pred_region
      %s45 = ssub.s32 16, 16
      %46 = vsyncadd [#allocation3], %s45
      %s48 = sshll.u32 [#allocation2], 4
      %s49 = int_to_ptr.vmem [resolvable:$true] %s48
      %51 = dma.hbm_to_vmem [thread:$0]  %s2, 16, %s49, [#allocation3]
    $region13: #{_lambda_.1} parent=1 // pred_fallthru
      _
    // Predicated region
    $region14: #{_lambda_.1} parent=1 // pred_check
      _
    $region15: #{_lambda_.1} parent=1 // pred_check_branch
      %53 = sbr.rel (0) target = $region17
    $region16: #{_lambda_.1} parent=1 // pred_region
      _
    $region17: #{_lambda_.1} parent=1 // pred_fallthru
      _
    // Predicated region
    $region18: #{_lambda_.1} parent=1 // pred_check
      _
    $region19: #{_lambda_.1} parent=1 // pred_check_branch
      %55 = sbr.rel (0) target = $region21
    $region20: #{_lambda_.1} parent=1 // pred_region
      %s57 = ssub.s32 16, 16
      %58 = vsyncadd [#allocation5], %s57
      %s60 = sshll.u32 [#allocation4], 4
      %s61 = int_to_ptr.vmem [resolvable:$true] %s60
      %63 = dma.hbm_to_vmem [thread:$0]  %s4, 16, %s61, [#allocation5]
    $region21: #{_lambda_.1} parent=1 // pred_fallthru
      _
    // Predicated region
    $region22: #{_lambda_.1} parent=1 // pred_check
      _
    $region23: #{_lambda_.1} parent=1 // pred_check_branch
      %65 = sbr.rel (0) target = $region25
    $region24: #{_lambda_.1} parent=1 // pred_region
      %s67 = ssub.s32 16, 16
      %68 = vsyncadd [#allocation5], %s67
      %s70 = sshll.u32 [#allocation6], 4
      %s71 = int_to_ptr.vmem [resolvable:$true] %s70
      %73 = dma.hbm_to_vmem [thread:$0]  %s5, 16, %s71, [#allocation5]
    $region25: #{_lambda_.1} parent=1 // pred_fallthru
      _
    // Predicated region
    $region26: #{_lambda_.1} parent=1 // pred_check
      _
    $region27: #{_lambda_.1} parent=1 // pred_check_branch
      %75 = sbr.rel (0) target = $region29
    $region28: #{_lambda_.1} parent=1 // pred_region
      %s77 = ssub.s32 384, 384
      %78 = vsyncadd [#allocation8], %s77
      %s79 = sshll.u32 [#allocation7], 4
      %s80 = int_to_ptr.vmem [resolvable:$true] %s79
      %85 = dma.hbm_to_vmem [thread:$0]  %s6, 384, %s80, [#allocation8], 128, 128, 8
    $region29: #{_lambda_.1} parent=1 // pred_fallthru
      _
    // Predicated region
    $region30: #{_lambda_.1} parent=1 // pred_check
      _
    $region31: #{_lambda_.1} parent=1 // pred_check_branch
      %87 = sbr.rel (0) target = $region33
    $region32: #{_lambda_.1} parent=1 // pred_region
      %s89 = ssub.s32 16, 16
      %90 = vsyncadd [#allocation8], %s89
      %s92 = sshll.u32 [#allocation9], 4
      %s93 = int_to_ptr.vmem [resolvable:$true] %s92
      %95 = dma.hbm_to_vmem [thread:$0]  %s7, 16, %s93, [#allocation8]
    $region33: #{_lambda_.1} parent=1 // pred_fallthru
      _
    // Predicated region
    $region34: #{_lambda_.1} parent=1 // pred_check
      _
    $region35: #{_lambda_.1} parent=1 // pred_check_branch
      %97 = sbr.rel (0) target = $region37
    $region36: #{_lambda_.1} parent=1 // pred_region
      %s99 = ssub.s32 640, 640
      %100 = vsyncadd [#allocation11], %s99
      %s101 = sshll.u32 [#allocation10], 4
      %s102 = int_to_ptr.vmem [resolvable:$true] %s101
      %107 = dma.hbm_to_vmem [thread:$0]  %s8, 640, %s102, [#allocation11], 128, 128, 8
    $region37: #{_lambda_.1} parent=1 // pred_fallthru
      _
    // Predicated region
    $region38: #{_lambda_.1} parent=1 // pred_check
      _
    $region39: #{_lambda_.1} parent=1 // pred_check_branch
      %109 = sbr.rel (0) target = $region41
    $region40: #{_lambda_.1} parent=1 // pred_region
      %s111 = ssub.s32 512, 512
      %112 = vsyncadd [#allocation11], %s111
      %s113 = sshll.u32 [#allocation12], 4
      %s114 = int_to_ptr.vmem [resolvable:$true] %s113
      %119 = dma.hbm_to_vmem [thread:$0]  %s9, 512, %s114, [#allocation11], 128, 128, 8
    $region41: #{_lambda_.1} parent=1 // pred_fallthru
      _
    // Predicated region
    $region42: #{_lambda_.1} parent=1 // pred_check
      _
    $region43: #{_lambda_.1} parent=1 // pred_check_branch
      %121 = sbr.rel (0) target = $region45
    $region44: #{_lambda_.1} parent=1 // pred_region
      %s123 = ssub.s32 640, 640
      %124 = vsyncadd [#allocation14], %s123
      %s125 = sshll.u32 [#allocation13], 4
      %s126 = int_to_ptr.vmem [resolvable:$true] %s125
      %131 = dma.hbm_to_vmem [thread:$0]  %s10, 640, %s126, [#allocation14], 128, 128, 8
    $region45: #{_lambda_.1} parent=1 // pred_fallthru
      _
    // Predicated region
    $region46: #{_lambda_.1} parent=1 // pred_check
      _
    $region47: #{_lambda_.1} parent=1 // pred_check_branch
      %133 = sbr.rel (0) target = $region49
    $region48: #{_lambda_.1} parent=1 // pred_region
      %s135 = ssub.s32 16, 16
      %136 = vsyncadd [#allocation14], %s135
      %s138 = sshll.u32 [#allocation15], 4
      %s139 = int_to_ptr.vmem [resolvable:$true] %s138
      %141 = dma.hbm_to_vmem [thread:$0]  %s11, 16, %s139, [#allocation14]
    $region49: #{_lambda_.1} parent=1 // pred_fallthru
      _
    // Predicated region
    $region50: #{_lambda_.1} parent=1 // pred_check
      _
    $region51: #{_lambda_.1} parent=1 // pred_check_branch
      %143 = sbr.rel (0) target = $region53
    $region52: #{_lambda_.1} parent=1 // pred_region
      %s145 = ssub.s32 64, 64
      %146 = vsyncadd [#allocation17], %s145
      %s148 = sshll.u32 [#allocation16], 4
      %s149 = int_to_ptr.vmem [resolvable:$true] %s148
      %151 = dma.hbm_to_vmem [thread:$0]  %s12, 64, %s149, [#allocation17]
    $region53: #{_lambda_.1} parent=1 // pred_fallthru
      _
    // Predicated region
    $region54: #{_lambda_.1} parent=1 // pred_check
      _
    $region55: #{_lambda_.1} parent=1 // pred_check_branch
      %153 = sbr.rel (0) target = $region57
    $region56: #{_lambda_.1} parent=1 // pred_region
      %s155 = ssub.s32 16, 16
      %156 = vsyncadd [#allocation17], %s155
      %s158 = sshll.u32 [#allocation18], 4
      %s159 = int_to_ptr.vmem [resolvable:$true] %s158
      %161 = dma.hbm_to_vmem [thread:$0]  %s13, 16, %s159, [#allocation17]
    $region57: #{_lambda_.1} parent=1 // pred_fallthru
      _
    // Predicated region
    $region58: #{_lambda_.1} parent=1 // pred_check
      _
    $region59: #{_lambda_.1} parent=1 // pred_check_branch
      %163 = sbr.rel (0) target = $region61
    $region60: #{_lambda_.1} parent=1 // pred_region
      %s165 = ssub.s32 640, 640
      %166 = vsyncadd [#allocation20], %s165
      %s167 = sshll.u32 [#allocation19], 4
      %s168 = int_to_ptr.vmem [resolvable:$true] %s167
      %173 = dma.hbm_to_vmem [thread:$0]  %s14, 640, %s168, [#allocation20], 128, 128, 8
    $region61: #{_lambda_.1} parent=1 // pred_fallthru
      _
    // Predicated region
    $region62: #{_lambda_.1} parent=1 // pred_check
      _
    $region63: #{_lambda_.1} parent=1 // pred_check_branch
      %175 = sbr.rel (0) target = $region65
    $region64: #{_lambda_.1} parent=1 // pred_region
      %s177 = ssub.s32 16, 16
      %178 = vsyncadd [#allocation20], %s177
      %s180 = sshll.u32 [#allocation21], 4
      %s181 = int_to_ptr.vmem [resolvable:$true] %s180
      %183 = dma.hbm_to_vmem [thread:$0]  %s15, 16, %s181, [#allocation20]
    $region65: #{_lambda_.1} parent=1 // pred_fallthru
      _
    // Predicated region
    $region66: #{_lambda_.1} parent=1 // pred_check
      _
    $region67: #{_lambda_.1} parent=1 // pred_check_branch
      %185 = sbr.rel (0) target = $region69
    $region68: #{_lambda_.1} parent=1 // pred_region
      %s187 = ssub.s32 16, 16
      %188 = vsyncadd [#allocation23], %s187
      %s190 = sshll.u32 [#allocation22], 4
      %s191 = int_to_ptr.vmem [resolvable:$true] %s190
      %193 = dma.hbm_to_vmem [thread:$0]  %s16, 16, %s191, [#allocation23]
    $region69: #{_lambda_.1} parent=1 // pred_fallthru
      _
    // Predicated region
    $region70: #{_lambda_.1} parent=1 // pred_check
      _
    $region71: #{_lambda_.1} parent=1 // pred_check_branch
      %195 = sbr.rel (0) target = $region73
    $region72: #{_lambda_.1} parent=1 // pred_region
      %s197 = ssub.s32 16, 16
      %198 = vsyncadd [#allocation23], %s197
      %s200 = sshll.u32 [#allocation24], 4
      %s201 = int_to_ptr.vmem [resolvable:$true] %s200
      %203 = dma.hbm_to_vmem [thread:$0]  %s17, 16, %s201, [#allocation23]
    $region73: #{_lambda_.1} parent=1 // pred_fallthru
      _
    // Predicated region
    $region74: #{_lambda_.1} parent=1 // pred_check
      _
    $region75: #{_lambda_.1} parent=1 // pred_check_branch
      %205 = sbr.rel (0) target = $region77
    $region76: #{_lambda_.1} parent=1 // pred_region
      %s207 = ssub.s32 384, 384
      %208 = vsyncadd [#allocation26], %s207
      %s209 = sshll.u32 [#allocation25], 4
      %s210 = int_to_ptr.vmem [resolvable:$true] %s209
      %215 = dma.hbm_to_vmem [thread:$0]  %s18, 384, %s210, [#allocation26], 128, 128, 8
    $region77: #{_lambda_.1} parent=1 // pred_fallthru
      _
    // Predicated region
    $region78: #{_lambda_.1} parent=1 // pred_check
      _
    $region79: #{_lambda_.1} parent=1 // pred_check_branch
      %217 = sbr.rel (0) target = $region81
    $region80: #{_lambda_.1} parent=1 // pred_region
      %s219 = ssub.s32 16, 16
      %220 = vsyncadd [#allocation26], %s219
      %s222 = sshll.u32 [#allocation27], 4
      %s223 = int_to_ptr.vmem [resolvable:$true] %s222
      %225 = dma.hbm_to_vmem [thread:$0]  %s19, 16, %s223, [#allocation26]
    $region81: #{_lambda_.1} parent=1 // pred_fallthru
      _
    // Predicated region
    $region82: #{_lambda_.1} parent=1 // pred_check
      _
    $region83: #{_lambda_.1} parent=1 // pred_check_branch
      %227 = sbr.rel (0) target = $region85
    $region84: #{_lambda_.1} parent=1 // pred_region
      %228 = dma.done [#allocation3], 16
    $region85: #{_lambda_.1} parent=1 // pred_fallthru
      _
    // Predicated region
    $region86: #{_lambda_.1} parent=1 // pred_check
      _
    $region87: #{_lambda_.1} parent=1 // pred_check_branch
      %230 = sbr.rel (0) target = $region89
    $region88: #{_lambda_.1} parent=1 // pred_region
      %231 = dma.done [#allocation5], 16
    $region89: #{_lambda_.1} parent=1 // pred_fallthru
      _
    // Predicated region
    $region90: #{_lambda_.1} parent=1 // pred_check
      _
    $region91: #{_lambda_.1} parent=1 // pred_check_branch
      %233 = sbr.rel (0) target = $region93
    $region92: #{_lambda_.1} parent=1 // pred_region
      %234 = dma.done [#allocation5], 16
    $region93: #{_lambda_.1} parent=1 // pred_fallthru
      _
    // Predicated region
    $region94: #{_lambda_.1} parent=1 // pred_check
      _
    $region95: #{_lambda_.1} parent=1 // pred_check_branch
      %236 = sbr.rel (0) target = $region97
    $region96: #{_lambda_.1} parent=1 // pred_region
      %237 = dma.done [#allocation8], 384
    $region97: #{_lambda_.1} parent=1 // pred_fallthru
      _
    // Predicated region
    $region98: #{_lambda_.1} parent=1 // pred_check
      _
    $region99: #{_lambda_.1} parent=1 // pred_check_branch
      %239 = sbr.rel (0) target = $region101
    $region100: #{_lambda_.1} parent=1 // pred_region
      %240 = dma.done [#allocation8], 16
    $region101: #{_lambda_.1} parent=1 // pred_fallthru
      _
    // Predicated region
    $region102: #{_lambda_.1} parent=1 // pred_check
      _
    $region103: #{_lambda_.1} parent=1 // pred_check_branch
      %242 = sbr.rel (0) target = $region105
    $region104: #{_lambda_.1} parent=1 // pred_region
      %243 = dma.done [#allocation11], 640
    $region105: #{_lambda_.1} parent=1 // pred_fallthru
      _
    // Predicated region
    $region106: #{_lambda_.1} parent=1 // pred_check
      _
    $region107: #{_lambda_.1} parent=1 // pred_check_branch
      %245 = sbr.rel (0) target = $region109
    $region108: #{_lambda_.1} parent=1 // pred_region
      %246 = dma.done [#allocation11], 512
    $region109: #{_lambda_.1} parent=1 // pred_fallthru
      _
    // Predicated region
    $region110: #{_lambda_.1} parent=1 // pred_check
      _
    $region111: #{_lambda_.1} parent=1 // pred_check_branch
      %248 = sbr.rel (0) target = $region113
    $region112: #{_lambda_.1} parent=1 // pred_region
      %249 = dma.done [#allocation14], 640
    $region113: #{_lambda_.1} parent=1 // pred_fallthru
      _
    // Predicated region
    $region114: #{_lambda_.1} parent=1 // pred_check
      _
    $region115: #{_lambda_.1} parent=1 // pred_check_branch
      %251 = sbr.rel (0) target = $region117
    $region116: #{_lambda_.1} parent=1 // pred_region
      %252 = dma.done [#allocation14], 16
    $region117: #{_lambda_.1} parent=1 // pred_fallthru
      _
    // Predicated region
    $region118: #{_lambda_.1} parent=1 // pred_check
      _
    $region119: #{_lambda_.1} parent=1 // pred_check_branch
      %254 = sbr.rel (0) target = $region121
    $region120: #{_lambda_.1} parent=1 // pred_region
      %255 = dma.done [#allocation17], 64
    $region121: #{_lambda_.1} parent=1 // pred_fallthru
      _
    // Predicated region
    $region122: #{_lambda_.1} parent=1 // pred_check
      _
    $region123: #{_lambda_.1} parent=1 // pred_check_branch
      %257 = sbr.rel (0) target = $region125
    $region124: #{_lambda_.1} parent=1 // pred_region
      %258 = dma.done [#allocation17], 16
    $region125: #{_lambda_.1} parent=1 // pred_fallthru
      _
    // Predicated region
    $region126: #{_lambda_.1} parent=1 // pred_check
      _
    $region127: #{_lambda_.1} parent=1 // pred_check_branch
      %260 = sbr.rel (0) target = $region129
    $region128: #{_lambda_.1} parent=1 // pred_region
      %261 = dma.done [#allocation20], 640
    $region129: #{_lambda_.1} parent=1 // pred_fallthru
      _
    // Predicated region
    $region130: #{_lambda_.1} parent=1 // pred_check
      _
    $region131: #{_lambda_.1} parent=1 // pred_check_branch
      %263 = sbr.rel (0) target = $region133
    $region132: #{_lambda_.1} parent=1 // pred_region
      %264 = dma.done [#allocation20], 16
    $region133: #{_lambda_.1} parent=1 // pred_fallthru
      _
    // Predicated region
    $region134: #{_lambda_.1} parent=1 // pred_check
      _
    $region135: #{_lambda_.1} parent=1 // pred_check_branch
      %266 = sbr.rel (0) target = $region137
    $region136: #{_lambda_.1} parent=1 // pred_region
      %267 = dma.done [#allocation23], 16
    $region137: #{_lambda_.1} parent=1 // pred_fallthru
      _
    // Predicated region
    $region138: #{_lambda_.1} parent=1 // pred_check
      _
    $region139: #{_lambda_.1} parent=1 // pred_check_branch
      %269 = sbr.rel (0) target = $region141
    $region140: #{_lambda_.1} parent=1 // pred_region
      %270 = dma.done [#allocation23], 16
    $region141: #{_lambda_.1} parent=1 // pred_fallthru
      _
    // Predicated region
    $region142: #{_lambda_.1} parent=1 // pred_check
      _
    $region143: #{_lambda_.1} parent=1 // pred_check_branch
      %272 = sbr.rel (0) target = $region145
    $region144: #{_lambda_.1} parent=1 // pred_region
      %273 = dma.done [#allocation26], 384
    $region145: #{_lambda_.1} parent=1 // pred_fallthru
      _
    // Predicated region
    $region146: #{_lambda_.1} parent=1 // pred_check
      _
    $region147: #{_lambda_.1} parent=1 // pred_check_branch
      %275 = sbr.rel (0) target = $region149
    $region148: #{_lambda_.1} parent=1 // pred_region
      %276 = dma.done [#allocation26], 16
    $region149: #{_lambda_.1} parent=1 // pred_fallthru
      _
    %v277 = vld [vmem:[%s0] sm:$0x3]
    %v278 = vld [vmem:[%s1] sm:$0xff]
    %v279 = vld [vmem:[%s1 + $0x8] sm:$0xff]
    %v280 = vld [vmem:[%s1 + $0x10] sm:$0xff]
    %v281 = vld [vmem:[%s1 + $0x18] sm:$0xff]
    %v282 = vld [vmem:[%s1 + $0x20] sm:$0xff]
    %v283 = vld [vmem:[%s1 + $0x28] sm:$0xff]
    %v284 = vld [vmem:[%s1 + $0x30] sm:$0x3f]
    %v285 = vld [vmem:[#allocation2] sm:$0x1]
    %v287 = vlaneseq
    %v288 = vshrl.u32 %v287, 7
    %v289 = vsub.s32 0, %v288
    %v290 = vrot.slane %v285, %v289
    %vm292 = vcmask 441344
    %v294 = vsel %vm292, %v277, 0
    %vm296 = vcmask 1045504
    %v298 = vsel %vm296, %v284, 0
    %300 = vmatprep.subr.mxu0 0.0
    %301 = vmatpush1.msra.mxu0 0.0
    %302 = vmatprep.subr.mxu0 0.0
    %303 = vmatpush1.msra.mxu0 0.0
    %304 = vmatprep.subr.mxu0 0.0
    %305 = vmatpush1.msra.mxu0 0.0
    %306 = vmatprep.subr.mxu0 0.0
    %307 = vmatpush1.msra.mxu0 0.0
    %308 = vmatprep.subr.mxu0 0.0
    %309 = vmatpush1.msra.mxu0 0.0
    %310 = vmatprep.subr.mxu0 0.0
    %311 = vmatpush1.msra.mxu0 0.0
    %312 = vmatprep.subr.mxu0 0.0
    %313 = vmatpush1.msra.mxu0 0.0
    %314 = vmatprep.subr.mxu0 0.0
    %315 = vmatpush1.msra.mxu0 0.0
    %316 = vmatprep.subr.mxu0 0.0
    %317 = vmatpush1.msra.mxu0 0.0
    %318 = vmatprep.subr.mxu0 0.0
    %319 = vmatpush1.msra.mxu0 %v298
    %320 = vmatprep.subr.mxu0 0.0
    %321 = vmatpush1.msra.mxu0 %v283
    %322 = vmatprep.subr.mxu0 0.0
    %323 = vmatpush1.msra.mxu0 %v282
    %324 = vmatprep.subr.mxu0 0.0
    %325 = vmatpush1.msra.mxu0 %v281
    %326 = vmatprep.subr.mxu0 0.0
    %327 = vmatpush1.msra.mxu0 %v280
    %328 = vmatprep.subr.mxu0 0.0
    %329 = vmatpush1.msra.mxu0 %v279
    %330 = vmatprep.subr.mxu0 0.0
    %331 = vmatpush1.msra.mxu0 %v278
    %332 = vmatprep.subr.mxu0 0.0
    %333 = vmatpush2.msra.mxu0 0.0
    %334 = vmatprep.subr.mxu0 0.0
    %335 = vmatpush2.msra.mxu0 0.0
    %336 = vmatprep.subr.mxu0 0.0
    %337 = vmatpush2.msra.mxu0 0.0
    %338 = vmatprep.subr.mxu0 0.0
    %339 = vmatpush2.msra.mxu0 0.0
    %340 = vmatprep.subr.mxu0 0.0
    %341 = vmatpush2.msra.mxu0 0.0
    %342 = vmatprep.subr.mxu0 0.0
    %343 = vmatpush2.msra.mxu0 0.0
    %344 = vmatprep.subr.mxu0 0.0
    %345 = vmatpush2.msra.mxu0 0.0
    %346 = vmatprep.subr.mxu0 0.0
    %347 = vmatpush2.msra.mxu0 0.0
    %348 = vmatprep.subr.mxu0 0.0
    %349 = vmatpush2.msra.mxu0 0.0
    %350 = vmatprep.subr.mxu0 0.0
    %351 = vmatpush2.msra.mxu0 0.0
    %352 = vmatprep.subr.mxu0 0.0
    %353 = vmatpush2.msra.mxu0 0.0
    %354 = vmatprep.subr.mxu0 0.0
    %355 = vmatpush2.msra.mxu0 0.0
    %356 = vmatprep.subr.mxu0 0.0
    %357 = vmatpush2.msra.mxu0 0.0
    %358 = vmatprep.subr.mxu0 0.0
    %359 = vmatpush2.msra.mxu0 0.0
    %360 = vmatprep.subr.mxu0 0.0
    %361 = vmatpush2.msra.mxu0 0.0
    %362 = vmatprep.subr.mxu0 0.0
    %363 = vmatpush2.msra.mxu0 0.0
    %364 = vmatprep.mubr.f32.mxu0 0.0
    %365 = vmatmul.mubr.f32.gmra.mxu0 %v294
    %v366 = vpop.f32.mrf.mxu0
    %v367 = vadd.f32 %v290, %v366
    %v368 = vpop.f32.mrf.mxu0
    %369 = vdwg.mxu0
    %v370 = vld [vmem:[#allocation4] sm:$0x1]
    %v371 = vld [vmem:[#allocation6] sm:$0x1]
    %v372 = vld [vmem:[%s3] sm:$0xff]
    %v373 = vld [vmem:[%s3 + $0x8] sm:$0xff]
    %v374 = vld [vmem:[%s3 + $0x10] sm:$0x3]
    %vm375 = vcmask 146432
    %v377 = vsel %vm375, %v367, 0
    %vm379 = vcmask 1041408
    %v381 = vsel %vm379, %v374, 0
    %383 = vmatprep.subr.mxu0 0.0
    %384 = vmatpush1.msra.mxu0 0.0
    %385 = vmatprep.subr.mxu0 0.0
    %386 = vmatpush1.msra.mxu0 0.0
    %387 = vmatprep.subr.mxu0 0.0
    %388 = vmatpush1.msra.mxu0 0.0
    %389 = vmatprep.subr.mxu0 0.0
    %390 = vmatpush1.msra.mxu0 0.0
    %391 = vmatprep.subr.mxu0 0.0
    %392 = vmatpush1.msra.mxu0 0.0
    %393 = vmatprep.subr.mxu0 0.0
    %394 = vmatpush1.msra.mxu0 0.0
    %395 = vmatprep.subr.mxu0 0.0
    %396 = vmatpush1.msra.mxu0 0.0
    %397 = vmatprep.subr.mxu0 0.0
    %398 = vmatpush1.msra.mxu0 0.0
    %399 = vmatprep.subr.mxu0 0.0
    %400 = vmatpush1.msra.mxu0 0.0
    %401 = vmatprep.subr.mxu0 0.0
    %402 = vmatpush1.msra.mxu0 0.0
    %403 = vmatprep.subr.mxu0 0.0
    %404 = vmatpush1.msra.mxu0 0.0
    %405 = vmatprep.subr.mxu0 0.0
    %406 = vmatpush1.msra.mxu0 0.0
    %407 = vmatprep.subr.mxu0 0.0
    %408 = vmatpush1.msra.mxu0 0.0
    %409 = vmatprep.subr.mxu0 0.0
    %410 = vmatpush1.msra.mxu0 %v381
    %411 = vmatprep.subr.mxu0 0.0
    %412 = vmatpush1.msra.mxu0 %v373
    %413 = vmatprep.subr.mxu0 0.0
    %414 = vmatpush1.msra.mxu0 %v372
    %415 = vmatprep.subr.mxu0 0.0
    %416 = vmatpush2.msra.mxu0 0.0
    %417 = vmatprep.subr.mxu0 0.0
    %418 = vmatpush2.msra.mxu0 0.0
    %419 = vmatprep.subr.mxu0 0.0
    %420 = vmatpush2.msra.mxu0 0.0
    %421 = vmatprep.subr.mxu0 0.0
    %422 = vmatpush2.msra.mxu0 0.0
    %423 = vmatprep.subr.mxu0 0.0
    %424 = vmatpush2.msra.mxu0 0.0
    %425 = vmatprep.subr.mxu0 0.0
    %426 = vmatpush2.msra.mxu0 0.0
    %427 = vmatprep.subr.mxu0 0.0
    %428 = vmatpush2.msra.mxu0 0.0
    %429 = vmatprep.subr.mxu0 0.0
    %430 = vmatpush2.msra.mxu0 0.0
    %431 = vmatprep.subr.mxu0 0.0
    %432 = vmatpush2.msra.mxu0 0.0
    %433 = vmatprep.subr.mxu0 0.0
    %434 = vmatpush2.msra.mxu0 0.0
    %435 = vmatprep.subr.mxu0 0.0
    %436 = vmatpush2.msra.mxu0 0.0
    %437 = vmatprep.subr.mxu0 0.0
    %438 = vmatpush2.msra.mxu0 0.0
    %439 = vmatprep.subr.mxu0 0.0
    %440 = vmatpush2.msra.mxu0 0.0
    %441 = vmatprep.subr.mxu0 0.0
    %442 = vmatpush2.msra.mxu0 0.0
    %443 = vmatprep.subr.mxu0 0.0
    %444 = vmatpush2.msra.mxu0 0.0
    %445 = vmatprep.subr.mxu0 0.0
    %446 = vmatpush2.msra.mxu0 0.0
    %447 = vmatprep.mubr.f32.mxu0 0.0
    %448 = vmatmul.mubr.f32.gmra.mxu0 %v377
    %v449 = vpop.f32.mrf.mxu0
    %v450 = vadd.f32 0.0, %v449
    %v451 = vpop.f32.mrf.mxu0
    %452 = vdwg.mxu0
    %v453 = vsub.f32 %v367, %v450
    %v454 = vmul.f32 %v453, %v453
    %v456 = vsel %vm375, %v454, 0
    %458 = vmatprep.subr.mxu0 0.0
    %459 = vmatpush1.msra.mxu0 0.0
    %460 = vmatprep.subr.mxu0 0.0
    %461 = vmatpush1.msra.mxu0 0.0
    %462 = vmatprep.subr.mxu0 0.0
    %463 = vmatpush1.msra.mxu0 0.0
    %464 = vmatprep.subr.mxu0 0.0
    %465 = vmatpush1.msra.mxu0 0.0
    %466 = vmatprep.subr.mxu0 0.0
    %467 = vmatpush1.msra.mxu0 0.0
    %468 = vmatprep.subr.mxu0 0.0
    %469 = vmatpush1.msra.mxu0 0.0
    %470 = vmatprep.subr.mxu0 0.0
    %471 = vmatpush1.msra.mxu0 0.0
    %472 = vmatprep.subr.mxu0 0.0
    %473 = vmatpush1.msra.mxu0 0.0
    %474 = vmatprep.subr.mxu0 0.0
    %475 = vmatpush1.msra.mxu0 0.0
    %476 = vmatprep.subr.mxu0 0.0
    %477 = vmatpush1.msra.mxu0 0.0
    %478 = vmatprep.subr.mxu0 0.0
    %479 = vmatpush1.msra.mxu0 0.0
    %480 = vmatprep.subr.mxu0 0.0
    %481 = vmatpush1.msra.mxu0 0.0
    %482 = vmatprep.subr.mxu0 0.0
    %483 = vmatpush1.msra.mxu0 0.0
    %484 = vmatprep.subr.mxu0 0.0
    %485 = vmatpush1.msra.mxu0 %v381
    %486 = vmatprep.subr.mxu0 0.0
    %487 = vmatpush1.msra.mxu0 %v373
    %488 = vmatprep.subr.mxu0 0.0
    %489 = vmatpush1.msra.mxu0 %v372
    %490 = vmatprep.subr.mxu0 0.0
    %491 = vmatpush2.msra.mxu0 0.0
    %492 = vmatprep.subr.mxu0 0.0
    %493 = vmatpush2.msra.mxu0 0.0
    %494 = vmatprep.subr.mxu0 0.0
    %495 = vmatpush2.msra.mxu0 0.0
    %496 = vmatprep.subr.mxu0 0.0
    %497 = vmatpush2.msra.mxu0 0.0
    %498 = vmatprep.subr.mxu0 0.0
    %499 = vmatpush2.msra.mxu0 0.0
    %500 = vmatprep.subr.mxu0 0.0
    %501 = vmatpush2.msra.mxu0 0.0
    %502 = vmatprep.subr.mxu0 0.0
    %503 = vmatpush2.msra.mxu0 0.0
    %504 = vmatprep.subr.mxu0 0.0
    %505 = vmatpush2.msra.mxu0 0.0
    %506 = vmatprep.subr.mxu0 0.0
    %507 = vmatpush2.msra.mxu0 0.0
    %508 = vmatprep.subr.mxu0 0.0
    %509 = vmatpush2.msra.mxu0 0.0
    %510 = vmatprep.subr.mxu0 0.0
    %511 = vmatpush2.msra.mxu0 0.0
    %512 = vmatprep.subr.mxu0 0.0
    %513 = vmatpush2.msra.mxu0 0.0
    %514 = vmatprep.subr.mxu0 0.0
    %515 = vmatpush2.msra.mxu0 0.0
    %516 = vmatprep.subr.mxu0 0.0
    %517 = vmatpush2.msra.mxu0 0.0
    %518 = vmatprep.subr.mxu0 0.0
    %519 = vmatpush2.msra.mxu0 0.0
    %520 = vmatprep.subr.mxu0 0.0
    %521 = vmatpush2.msra.mxu0 0.0
    %522 = vmatprep.mubr.f32.mxu0 0.0
    %523 = vmatmul.mubr.f32.gmra.mxu0 %v456
    %v524 = vpop.f32.mrf.mxu0
    %v525 = vadd.f32 1e-05, %v524
    %v526 = vpop.f32.mrf.mxu0
    %527 = vdwg.mxu0
    %v528 = vrsqrt.pop %v525
    %v529 = vmul.f32 %v525, %v528
    %vm530 = vcmp.eq.f32.partialorder %v525, inf
    %v531 = vsel %vm530, %v525, %v529
    %vm532 = vcmp.eq.f32.partialorder %v525, 0.0
    %v533 = vand.u32 %v525, 2147483648
    %v534 = vsel %vm532, %v533, %v531
    %v535 = vrcp.pop %v534
    %v536 = vmul.f32 %v453, %v535
    %v538 = vlaneseq
    %v539 = vshrl.u32 %v538, 7
    %v540 = vsub.s32 0, %v539
    %v541 = vrot.slane %v370, %v540
    %v543 = vmul.f32 %v536, %v541
    %v545 = vlaneseq
    %v546 = vshrl.u32 %v545, 7
    %v547 = vsub.s32 0, %v546
    %v548 = vrot.slane %v371, %v547
    %v550 = vadd.f32 %v543, %v548
    %vm551 = vcmp.gt.f32.partialorder %v550, 0.0
    %v552 = vmul.f32 %v550, 1.442695
    %v553 = vpow.pop %v552
    %v554 = vsub.f32 %v553, 1.0
    %v555 = vsel %vm551, %v550, %v554
    %v556 = vld [vmem:[#allocation7] sm:$0xff]
    %v557 = vld [vmem:[#allocation7 + $0x8] sm:$0xff]
    %v558 = vld [vmem:[#allocation7 + $0x10] sm:$0x3]
    %v559 = vld [vmem:[#allocation9] sm:$0x1]
    %v561 = vlaneseq
    %v562 = vshrl.u32 %v561, 7
    %v563 = vsub.s32 0, %v562
    %v564 = vrot.slane %v559, %v563
    %v567 = vsel %vm375, %v555, 0
    %v570 = vsel %vm379, %v558, 0
    %572 = vmatprep.subr.mxu0 0.0
    %573 = vmatpush1.msra.mxu0 0.0
    %574 = vmatprep.subr.mxu0 0.0
    %575 = vmatpush1.msra.mxu0 0.0
    %576 = vmatprep.subr.mxu0 0.0
    %577 = vmatpush1.msra.mxu0 0.0
    %578 = vmatprep.subr.mxu0 0.0
    %579 = vmatpush1.msra.mxu0 0.0
    %580 = vmatprep.subr.mxu0 0.0
    %581 = vmatpush1.msra.mxu0 0.0
    %582 = vmatprep.subr.mxu0 0.0
    %583 = vmatpush1.msra.mxu0 0.0
    %584 = vmatprep.subr.mxu0 0.0
    %585 = vmatpush1.msra.mxu0 0.0
    %586 = vmatprep.subr.mxu0 0.0
    %587 = vmatpush1.msra.mxu0 0.0
    %588 = vmatprep.subr.mxu0 0.0
    %589 = vmatpush1.msra.mxu0 0.0
    %590 = vmatprep.subr.mxu0 0.0
    %591 = vmatpush1.msra.mxu0 0.0
    %592 = vmatprep.subr.mxu0 0.0
    %593 = vmatpush1.msra.mxu0 0.0
    %594 = vmatprep.subr.mxu0 0.0
    %595 = vmatpush1.msra.mxu0 0.0
    %596 = vmatprep.subr.mxu0 0.0
    %597 = vmatpush1.msra.mxu0 0.0
    %598 = vmatprep.subr.mxu0 0.0
    %599 = vmatpush1.msra.mxu0 %v570
    %600 = vmatprep.subr.mxu0 0.0
    %601 = vmatpush1.msra.mxu0 %v557
    %602 = vmatprep.subr.mxu0 0.0
    %603 = vmatpush1.msra.mxu0 %v556
    %604 = vmatprep.subr.mxu0 0.0
    %605 = vmatpush2.msra.mxu0 0.0
    %606 = vmatprep.subr.mxu0 0.0
    %607 = vmatpush2.msra.mxu0 0.0
    %608 = vmatprep.subr.mxu0 0.0
    %609 = vmatpush2.msra.mxu0 0.0
    %610 = vmatprep.subr.mxu0 0.0
    %611 = vmatpush2.msra.mxu0 0.0
    %612 = vmatprep.subr.mxu0 0.0
    %613 = vmatpush2.msra.mxu0 0.0
    %614 = vmatprep.subr.mxu0 0.0
    %615 = vmatpush2.msra.mxu0 0.0
    %616 = vmatprep.subr.mxu0 0.0
    %617 = vmatpush2.msra.mxu0 0.0
    %618 = vmatprep.subr.mxu0 0.0
    %619 = vmatpush2.msra.mxu0 0.0
    %620 = vmatprep.subr.mxu0 0.0
    %621 = vmatpush2.msra.mxu0 0.0
    %622 = vmatprep.subr.mxu0 0.0
    %623 = vmatpush2.msra.mxu0 0.0
    %624 = vmatprep.subr.mxu0 0.0
    %625 = vmatpush2.msra.mxu0 0.0
    %626 = vmatprep.subr.mxu0 0.0
    %627 = vmatpush2.msra.mxu0 0.0
    %628 = vmatprep.subr.mxu0 0.0
    %629 = vmatpush2.msra.mxu0 0.0
    %630 = vmatprep.subr.mxu0 0.0
    %631 = vmatpush2.msra.mxu0 0.0
    %632 = vmatprep.subr.mxu0 0.0
    %633 = vmatpush2.msra.mxu0 0.0
    %634 = vmatprep.subr.mxu0 0.0
    %635 = vmatpush2.msra.mxu0 0.0
    %636 = vmatprep.mubr.f32.mxu0 0.0
    %637 = vmatmul.mubr.f32.gmra.mxu0 %v567
    %v638 = vpop.f32.mrf.mxu0
    %v639 = vadd.f32 %v564, %v638
    %v640 = vpop.f32.mrf.mxu0
    %641 = vdwg.mxu0
    %vm642 = vcmask 287744
    %643 = vst.msk [vmem:[%s21] sm:$0x3] %vm642, %v639
    %v644 = vld [vmem:[#allocation10] sm:$0xff]
    %v645 = vld [vmem:[#allocation10 + $0x8] sm:$0xff]
    %v646 = vld [vmem:[#allocation10 + $0x10] sm:$0xff]
    %v647 = vld [vmem:[#allocation10 + $0x18] sm:$0xff]
    %v648 = vld [vmem:[#allocation10 + $0x20] sm:$0xf]
    %vm649 = vcmask 293888
    %v651 = vsel %vm649, %v639, 0
    %vm653 = vcmask 1043456
    %v655 = vsel %vm653, %v648, 0
    %657 = vmatprep.subr.mxu0 0.0
    %658 = vmatpush1.msra.mxu0 0.0
    %659 = vmatprep.subr.mxu0 0.0
    %660 = vmatpush1.msra.mxu0 0.0
    %661 = vmatprep.subr.mxu0 0.0
    %662 = vmatpush1.msra.mxu0 0.0
    %663 = vmatprep.subr.mxu0 0.0
    %664 = vmatpush1.msra.mxu0 0.0
    %665 = vmatprep.subr.mxu0 0.0
    %666 = vmatpush1.msra.mxu0 0.0
    %667 = vmatprep.subr.mxu0 0.0
    %668 = vmatpush1.msra.mxu0 0.0
    %669 = vmatprep.subr.mxu0 0.0
    %670 = vmatpush1.msra.mxu0 0.0
    %671 = vmatprep.subr.mxu0 0.0
    %672 = vmatpush1.msra.mxu0 0.0
    %673 = vmatprep.subr.mxu0 0.0
    %674 = vmatpush1.msra.mxu0 0.0
    %675 = vmatprep.subr.mxu0 0.0
    %676 = vmatpush1.msra.mxu0 0.0
    %677 = vmatprep.subr.mxu0 0.0
    %678 = vmatpush1.msra.mxu0 0.0
    %679 = vmatprep.subr.mxu0 0.0
    %680 = vmatpush1.msra.mxu0 %v655
    %681 = vmatprep.subr.mxu0 0.0
    %682 = vmatpush1.msra.mxu0 %v647
    %683 = vmatprep.subr.mxu0 0.0
    %684 = vmatpush1.msra.mxu0 %v646
    %685 = vmatprep.subr.mxu0 0.0
    %686 = vmatpush1.msra.mxu0 %v645
    %687 = vmatprep.subr.mxu0 0.0
    %688 = vmatpush1.msra.mxu0 %v644
    %689 = vmatprep.subr.mxu0 0.0
    %690 = vmatpush2.msra.mxu0 0.0
    %691 = vmatprep.subr.mxu0 0.0
    %692 = vmatpush2.msra.mxu0 0.0
    %693 = vmatprep.subr.mxu0 0.0
    %694 = vmatpush2.msra.mxu0 0.0
    %695 = vmatprep.subr.mxu0 0.0
    %696 = vmatpush2.msra.mxu0 0.0
    %697 = vmatprep.subr.mxu0 0.0
    %698 = vmatpush2.msra.mxu0 0.0
    %699 = vmatprep.subr.mxu0 0.0
    %700 = vmatpush2.msra.mxu0 0.0
    %701 = vmatprep.subr.mxu0 0.0
    %702 = vmatpush2.msra.mxu0 0.0
    %703 = vmatprep.subr.mxu0 0.0
    %704 = vmatpush2.msra.mxu0 0.0
    %705 = vmatprep.subr.mxu0 0.0
    %706 = vmatpush2.msra.mxu0 0.0
    %707 = vmatprep.subr.mxu0 0.0
    %708 = vmatpush2.msra.mxu0 0.0
    %709 = vmatprep.subr.mxu0 0.0
    %710 = vmatpush2.msra.mxu0 0.0
    %711 = vmatprep.subr.mxu0 0.0
    %712 = vmatpush2.msra.mxu0 0.0
    %713 = vmatprep.subr.mxu0 0.0
    %714 = vmatpush2.msra.mxu0 0.0
    %715 = vmatprep.subr.mxu0 0.0
    %716 = vmatpush2.msra.mxu0 0.0
    %717 = vmatprep.subr.mxu0 0.0
    %718 = vmatpush2.msra.mxu0 0.0
    %719 = vmatprep.subr.mxu0 0.0
    %720 = vmatpush2.msra.mxu0 0.0
    %721 = vmatprep.mubr.f32.mxu0 0.0
    %722 = vmatmul.mubr.f32.gmra.mxu0 %v651
    %v723 = vpop.f32.mrf.mxu0
    %v724 = vadd.f32 0.0, %v723
    %v725 = vpop.f32.mrf.mxu0
    %726 = vdwg.mxu0
    %v727 = vmul.f32 %v724, %v724
    %v728 = vld [vmem:[#allocation12] sm:$0xff]
    %v729 = vld [vmem:[#allocation12 + $0x8] sm:$0xff]
    %v730 = vld [vmem:[#allocation12 + $0x10] sm:$0xff]
    %v731 = vld [vmem:[#allocation12 + $0x18] sm:$0xff]
    %vm732 = vcmask 261120
    %v734 = vsel %vm732, %v727, 0
    %736 = vmatprep.subr.mxu0 0.0
    %737 = vmatpush1.msra.mxu0 0.0
    %738 = vmatprep.subr.mxu0 0.0
    %739 = vmatpush1.msra.mxu0 0.0
    %740 = vmatprep.subr.mxu0 0.0
    %741 = vmatpush1.msra.mxu0 0.0
    %742 = vmatprep.subr.mxu0 0.0
    %743 = vmatpush1.msra.mxu0 0.0
    %744 = vmatprep.subr.mxu0 0.0
    %745 = vmatpush1.msra.mxu0 0.0
    %746 = vmatprep.subr.mxu0 0.0
    %747 = vmatpush1.msra.mxu0 0.0
    %748 = vmatprep.subr.mxu0 0.0
    %749 = vmatpush1.msra.mxu0 0.0
    %750 = vmatprep.subr.mxu0 0.0
    %751 = vmatpush1.msra.mxu0 0.0
    %752 = vmatprep.subr.mxu0 0.0
    %753 = vmatpush1.msra.mxu0 0.0
    %754 = vmatprep.subr.mxu0 0.0
    %755 = vmatpush1.msra.mxu0 0.0
    %756 = vmatprep.subr.mxu0 0.0
    %757 = vmatpush1.msra.mxu0 0.0
    %758 = vmatprep.subr.mxu0 0.0
    %759 = vmatpush1.msra.mxu0 0.0
    %760 = vmatprep.subr.mxu0 0.0
    %761 = vmatpush1.msra.mxu0 %v731
    %762 = vmatprep.subr.mxu0 0.0
    %763 = vmatpush1.msra.mxu0 %v730
    %764 = vmatprep.subr.mxu0 0.0
    %765 = vmatpush1.msra.mxu0 %v729
    %766 = vmatprep.subr.mxu0 0.0
    %767 = vmatpush1.msra.mxu0 %v728
    %768 = vmatprep.subr.mxu0 0.0
    %769 = vmatpush2.msra.mxu0 0.0
    %770 = vmatprep.subr.mxu0 0.0
    %771 = vmatpush2.msra.mxu0 0.0
    %772 = vmatprep.subr.mxu0 0.0
    %773 = vmatpush2.msra.mxu0 0.0
    %774 = vmatprep.subr.mxu0 0.0
    %775 = vmatpush2.msra.mxu0 0.0
    %776 = vmatprep.subr.mxu0 0.0
    %777 = vmatpush2.msra.mxu0 0.0
    %778 = vmatprep.subr.mxu0 0.0
    %779 = vmatpush2.msra.mxu0 0.0
    %780 = vmatprep.subr.mxu0 0.0
    %781 = vmatpush2.msra.mxu0 0.0
    %782 = vmatprep.subr.mxu0 0.0
    %783 = vmatpush2.msra.mxu0 0.0
    %784 = vmatprep.subr.mxu0 0.0
    %785 = vmatpush2.msra.mxu0 0.0
    %786 = vmatprep.subr.mxu0 0.0
    %787 = vmatpush2.msra.mxu0 0.0
    %788 = vmatprep.subr.mxu0 0.0
    %789 = vmatpush2.msra.mxu0 0.0
    %790 = vmatprep.subr.mxu0 0.0
    %791 = vmatpush2.msra.mxu0 0.0
    %792 = vmatprep.subr.mxu0 0.0
    %793 = vmatpush2.msra.mxu0 0.0
    %794 = vmatprep.subr.mxu0 0.0
    %795 = vmatpush2.msra.mxu0 0.0
    %796 = vmatprep.subr.mxu0 0.0
    %797 = vmatpush2.msra.mxu0 0.0
    %798 = vmatprep.subr.mxu0 0.0
    %799 = vmatpush2.msra.mxu0 0.0
    %800 = vmatprep.mubr.f32.mxu0 0.0
    %801 = vmatmul.mubr.f32.gmra.mxu0 %v734
    %v802 = vpop.f32.mrf.mxu0
    %v803 = vadd.f32 0.0, %v802
    %v804 = vpop.f32.mrf.mxu0
    %805 = vdwg.mxu0
    %807 = vrot.lane.b32.xlu0 %v803, 4
    %v808 = vpop.permute.xlu0 %807
    %v810 = vrcp.pop %v808
    %v811 = vmul.f32 %v803, %v810
    %v812 = vrsqrt.pop %v803
    %v813 = vmul.f32 %v803, %v812
    %vm814 = vcmp.eq.f32.partialorder %v803, inf
    %v815 = vsel %vm814, %v803, %v813
    %vm816 = vcmp.eq.f32.partialorder %v803, 0.0
    %v817 = vand.u32 %v803, 2147483648
    %v818 = vsel %vm816, %v817, %v815
    %v819 = vmul.f32 %v818, 0.22222222
    %v820 = vld [vmem:[#allocation13] sm:$0xff]
    %v821 = vld [vmem:[#allocation13 + $0x8] sm:$0xff]
    %v822 = vld [vmem:[#allocation13 + $0x10] sm:$0xff]
    %v823 = vld [vmem:[#allocation13 + $0x18] sm:$0xff]
    %v824 = vld [vmem:[#allocation13 + $0x20] sm:$0xf]
    %v825 = vld [vmem:[#allocation15] sm:$0x1]
    %v827 = vlaneseq
    %v828 = vshrl.u32 %v827, 7
    %v829 = vsub.s32 0, %v828
    %v830 = vrot.slane %v825, %v829
    %v833 = vsel %vm653, %v824, 0
    %835 = vmatprep.subr.mxu0 0.0
    %836 = vmatpush1.msra.mxu0 0.0
    %837 = vmatprep.subr.mxu0 0.0
    %838 = vmatpush1.msra.mxu0 0.0
    %839 = vmatprep.subr.mxu0 0.0
    %840 = vmatpush1.msra.mxu0 0.0
    %841 = vmatprep.subr.mxu0 0.0
    %842 = vmatpush1.msra.mxu0 0.0
    %843 = vmatprep.subr.mxu0 0.0
    %844 = vmatpush1.msra.mxu0 0.0
    %845 = vmatprep.subr.mxu0 0.0
    %846 = vmatpush1.msra.mxu0 0.0
    %847 = vmatprep.subr.mxu0 0.0
    %848 = vmatpush1.msra.mxu0 0.0
    %849 = vmatprep.subr.mxu0 0.0
    %850 = vmatpush1.msra.mxu0 0.0
    %851 = vmatprep.subr.mxu0 0.0
    %852 = vmatpush1.msra.mxu0 0.0
    %853 = vmatprep.subr.mxu0 0.0
    %854 = vmatpush1.msra.mxu0 0.0
    %855 = vmatprep.subr.mxu0 0.0
    %856 = vmatpush1.msra.mxu0 0.0
    %857 = vmatprep.subr.mxu0 0.0
    %858 = vmatpush1.msra.mxu0 %v833
    %859 = vmatprep.subr.mxu0 0.0
    %860 = vmatpush1.msra.mxu0 %v823
    %861 = vmatprep.subr.mxu0 0.0
    %862 = vmatpush1.msra.mxu0 %v822
    %863 = vmatprep.subr.mxu0 0.0
    %864 = vmatpush1.msra.mxu0 %v821
    %865 = vmatprep.subr.mxu0 0.0
    %866 = vmatpush1.msra.mxu0 %v820
    %867 = vmatprep.subr.mxu0 0.0
    %868 = vmatpush2.msra.mxu0 0.0
    %869 = vmatprep.subr.mxu0 0.0
    %870 = vmatpush2.msra.mxu0 0.0
    %871 = vmatprep.subr.mxu0 0.0
    %872 = vmatpush2.msra.mxu0 0.0
    %873 = vmatprep.subr.mxu0 0.0
    %874 = vmatpush2.msra.mxu0 0.0
    %875 = vmatprep.subr.mxu0 0.0
    %876 = vmatpush2.msra.mxu0 0.0
    %877 = vmatprep.subr.mxu0 0.0
    %878 = vmatpush2.msra.mxu0 0.0
    %879 = vmatprep.subr.mxu0 0.0
    %880 = vmatpush2.msra.mxu0 0.0
    %881 = vmatprep.subr.mxu0 0.0
    %882 = vmatpush2.msra.mxu0 0.0
    %883 = vmatprep.subr.mxu0 0.0
    %884 = vmatpush2.msra.mxu0 0.0
    %885 = vmatprep.subr.mxu0 0.0
    %886 = vmatpush2.msra.mxu0 0.0
    %887 = vmatprep.subr.mxu0 0.0
    %888 = vmatpush2.msra.mxu0 0.0
    %889 = vmatprep.subr.mxu0 0.0
    %890 = vmatpush2.msra.mxu0 0.0
    %891 = vmatprep.subr.mxu0 0.0
    %892 = vmatpush2.msra.mxu0 0.0
    %893 = vmatprep.subr.mxu0 0.0
    %894 = vmatpush2.msra.mxu0 0.0
    %895 = vmatprep.subr.mxu0 0.0
    %896 = vmatpush2.msra.mxu0 0.0
    %897 = vmatprep.subr.mxu0 0.0
    %898 = vmatpush2.msra.mxu0 0.0
    %899 = vmatprep.mubr.f32.mxu0 0.0
    %900 = vmatmul.mubr.f32.gmra.mxu0 %v651
    %v901 = vpop.f32.mrf.mxu0
    %v902 = vadd.f32 %v830, %v901
    %v903 = vpop.f32.mrf.mxu0
    %904 = vdwg.mxu0
    %v905 = vand.u32 2147483647, %v902
    %907 = vrot.lane.b32.xlu0 %v905, 124
    %v908 = vpop.permute.xlu0 %907
    %v910 = vmax.f32 %v905, %v908
    %v911 = vmin.f32 %v905, %v908
    %vm912 = vcmp.eq.f32.partialorder %v910, 0.0
    %v913 = vsel %vm912, 1.0, %v910
    %v914 = vrcp.pop %v913
    %v915 = vmul.f32 %v911, %v914
    %v916 = vmul.f32 %v915, %v915
    %v917 = vmul.f32 %v916, -0.0117212
    %v918 = vadd.f32 %v917, 0.05265332
    %v919 = vmul.f32 %v916, %v918
    %v920 = vadd.f32 %v919, -0.11643287
    %v921 = vmul.f32 %v916, %v920
    %v922 = vadd.f32 %v921, 0.19354346
    %v923 = vmul.f32 %v916, %v922
    %v924 = vadd.f32 %v923, -0.33262348
    %v925 = vmul.f32 %v916, %v924
    %v926 = vadd.f32 %v925, 0.99997723
    %v927 = vmul.f32 %v915, %v926
    %928 = vrot.lane.b32.xlu0 %v905, 4
    %v929 = vpop.permute.xlu0 %928
    %vm931 = vcmp.gt.f32.partialorder %v905, %v929
    %v932 = vsub.f32 1.5707964, %v927
    %934 = vrot.lane.b32.xlu0 %v932, 4
    %v935 = vpop.permute.xlu0 %934
    %938 = vrot.lane.b32.xlu0 %v927, 4
    %v939 = vpop.permute.xlu0 %938
    %v941 = vsel %vm931, %v935, %v939
    %vm942 = vcmp.lt.f32.partialorder %v902, 0.0
    %v943 = vsub.f32 3.1415927, %v941
    %945 = vrot.lane.b32.xlu0 %v943, 124
    %v946 = vpop.permute.xlu0 %945
    %949 = vrot.lane.b32.xlu0 %v941, 124
    %v950 = vpop.permute.xlu0 %949
    %v952 = vsel %vm942, %v946, %v950
    %v953 = vsub.f32 0.0, %v952
    %955 = vrot.lane.b32.xlu0 %v953, 4
    %v956 = vpop.permute.xlu0 %955
    %959 = vrot.lane.b32.xlu0 %v952, 4
    %v960 = vpop.permute.xlu0 %959
    %v962 = vsel %vm942, %v956, %v960
    %v963 = vrcp.pop 6.2831855
    %v964 = vmul.f32 %v962, %v963
    %966 = vrot.lane.b32.xlu0 %v964, 124
    %v967 = vpop.permute.xlu0 %966
    %vm969 = vcmask 25600
    %970 = vst.msk [vmem:[%s23] sm:$0x3] %vm969, %v967
    %vm971 = vcmask 58400
    %972 = vst.msk [vmem:[%s23] sm:$0x3] %vm971, %v811
    %974 = vrot.lane.b32.xlu0 %v819, 8
    %v975 = vpop.permute.xlu0 %974
    %vm977 = vcmask 91200
    %978 = vst.msk [vmem:[%s23] sm:$0x3] %vm977, %v975
    %980 = vrot.lane.b32.xlu0 %v902, 4
    %v981 = vpop.permute.xlu0 %980
    %vm983 = vcmask 124000
    %984 = vst.msk [vmem:[%s23] sm:$0x3] %vm983, %v981
    %v985 = vld [vmem:[#allocation16] sm:$0xf]
    %vm986 = vcmask 31744
    %v987 = vsel %vm986, %v819, 0
    %v990 = vsel %vm653, %v985, 0
    %992 = vmatprep.subr.mxu0 0.0
    %993 = vmatpush1.msra.mxu0 0.0
    %994 = vmatprep.subr.mxu0 0.0
    %995 = vmatpush1.msra.mxu0 0.0
    %996 = vmatprep.subr.mxu0 0.0
    %997 = vmatpush1.msra.mxu0 0.0
    %998 = vmatprep.subr.mxu0 0.0
    %999 = vmatpush1.msra.mxu0 0.0
    %1000 = vmatprep.subr.mxu0 0.0
    %1001 = vmatpush1.msra.mxu0 0.0
    %1002 = vmatprep.subr.mxu0 0.0
    %1003 = vmatpush1.msra.mxu0 0.0
    %1004 = vmatprep.subr.mxu0 0.0
    %1005 = vmatpush1.msra.mxu0 0.0
    %1006 = vmatprep.subr.mxu0 0.0
    %1007 = vmatpush1.msra.mxu0 0.0
    %1008 = vmatprep.subr.mxu0 0.0
    %1009 = vmatpush1.msra.mxu0 0.0
    %1010 = vmatprep.subr.mxu0 0.0
    %1011 = vmatpush1.msra.mxu0 0.0
    %1012 = vmatprep.subr.mxu0 0.0
    %1013 = vmatpush1.msra.mxu0 0.0
    %1014 = vmatprep.subr.mxu0 0.0
    %1015 = vmatpush1.msra.mxu0 0.0
    %1016 = vmatprep.subr.mxu0 0.0
    %1017 = vmatpush1.msra.mxu0 0.0
    %1018 = vmatprep.subr.mxu0 0.0
    %1019 = vmatpush1.msra.mxu0 0.0
    %1020 = vmatprep.subr.mxu0 0.0
    %1021 = vmatpush1.msra.mxu0 0.0
    %1022 = vmatprep.subr.mxu0 0.0
    %1023 = vmatpush1.msra.mxu0 %v990
    %1024 = vmatprep.subr.mxu0 0.0
    %1025 = vmatpush2.msra.mxu0 0.0
    %1026 = vmatprep.subr.mxu0 0.0
    %1027 = vmatpush2.msra.mxu0 0.0
    %1028 = vmatprep.subr.mxu0 0.0
    %1029 = vmatpush2.msra.mxu0 0.0
    %1030 = vmatprep.subr.mxu0 0.0
    %1031 = vmatpush2.msra.mxu0 0.0
    %1032 = vmatprep.subr.mxu0 0.0
    %1033 = vmatpush2.msra.mxu0 0.0
    %1034 = vmatprep.subr.mxu0 0.0
    %1035 = vmatpush2.msra.mxu0 0.0
    %1036 = vmatprep.subr.mxu0 0.0
    %1037 = vmatpush2.msra.mxu0 0.0
    %1038 = vmatprep.subr.mxu0 0.0
    %1039 = vmatpush2.msra.mxu0 0.0
    %1040 = vmatprep.subr.mxu0 0.0
    %1041 = vmatpush2.msra.mxu0 0.0
    %1042 = vmatprep.subr.mxu0 0.0
    %1043 = vmatpush2.msra.mxu0 0.0
    %1044 = vmatprep.subr.mxu0 0.0
    %1045 = vmatpush2.msra.mxu0 0.0
    %1046 = vmatprep.subr.mxu0 0.0
    %1047 = vmatpush2.msra.mxu0 0.0
    %1048 = vmatprep.subr.mxu0 0.0
    %1049 = vmatpush2.msra.mxu0 0.0
    %1050 = vmatprep.subr.mxu0 0.0
    %1051 = vmatpush2.msra.mxu0 0.0
    %1052 = vmatprep.subr.mxu0 0.0
    %1053 = vmatpush2.msra.mxu0 0.0
    %1054 = vmatprep.subr.mxu0 0.0
    %1055 = vmatpush2.msra.mxu0 0.0
    %1056 = vmatprep.mubr.f32.mxu0 0.0
    %1057 = vmatmul.mubr.f32.gmra.mxu0 %v987
    %v1058 = vpop.f32.mrf.mxu0
    %v1059 = vadd.f32 0.0, %v1058
    %v1060 = vpop.f32.mrf.mxu0
    %1061 = vdwg.mxu0
    %1063 = vrot.lane.b32.xlu0 %v811, 124
    %v1064 = vpop.permute.xlu0 %1063
    %v1065 = vsel %vm986, %v1064, 0
    %1067 = vmatprep.subr.mxu0 0.0
    %1068 = vmatpush1.msra.mxu0 0.0
    %1069 = vmatprep.subr.mxu0 0.0
    %1070 = vmatpush1.msra.mxu0 0.0
    %1071 = vmatprep.subr.mxu0 0.0
    %1072 = vmatpush1.msra.mxu0 0.0
    %1073 = vmatprep.subr.mxu0 0.0
    %1074 = vmatpush1.msra.mxu0 0.0
    %1075 = vmatprep.subr.mxu0 0.0
    %1076 = vmatpush1.msra.mxu0 0.0
    %1077 = vmatprep.subr.mxu0 0.0
    %1078 = vmatpush1.msra.mxu0 0.0
    %1079 = vmatprep.subr.mxu0 0.0
    %1080 = vmatpush1.msra.mxu0 0.0
    %1081 = vmatprep.subr.mxu0 0.0
    %1082 = vmatpush1.msra.mxu0 0.0
    %1083 = vmatprep.subr.mxu0 0.0
    %1084 = vmatpush1.msra.mxu0 0.0
    %1085 = vmatprep.subr.mxu0 0.0
    %1086 = vmatpush1.msra.mxu0 0.0
    %1087 = vmatprep.subr.mxu0 0.0
    %1088 = vmatpush1.msra.mxu0 0.0
    %1089 = vmatprep.subr.mxu0 0.0
    %1090 = vmatpush1.msra.mxu0 0.0
    %1091 = vmatprep.subr.mxu0 0.0
    %1092 = vmatpush1.msra.mxu0 0.0
    %1093 = vmatprep.subr.mxu0 0.0
    %1094 = vmatpush1.msra.mxu0 0.0
    %1095 = vmatprep.subr.mxu0 0.0
    %1096 = vmatpush1.msra.mxu0 0.0
    %1097 = vmatprep.subr.mxu0 0.0
    %1098 = vmatpush1.msra.mxu0 %v990
    %1099 = vmatprep.subr.mxu0 0.0
    %1100 = vmatpush2.msra.mxu0 0.0
    %1101 = vmatprep.subr.mxu0 0.0
    %1102 = vmatpush2.msra.mxu0 0.0
    %1103 = vmatprep.subr.mxu0 0.0
    %1104 = vmatpush2.msra.mxu0 0.0
    %1105 = vmatprep.subr.mxu0 0.0
    %1106 = vmatpush2.msra.mxu0 0.0
    %1107 = vmatprep.subr.mxu0 0.0
    %1108 = vmatpush2.msra.mxu0 0.0
    %1109 = vmatprep.subr.mxu0 0.0
    %1110 = vmatpush2.msra.mxu0 0.0
    %1111 = vmatprep.subr.mxu0 0.0
    %1112 = vmatpush2.msra.mxu0 0.0
    %1113 = vmatprep.subr.mxu0 0.0
    %1114 = vmatpush2.msra.mxu0 0.0
    %1115 = vmatprep.subr.mxu0 0.0
    %1116 = vmatpush2.msra.mxu0 0.0
    %1117 = vmatprep.subr.mxu0 0.0
    %1118 = vmatpush2.msra.mxu0 0.0
    %1119 = vmatprep.subr.mxu0 0.0
    %1120 = vmatpush2.msra.mxu0 0.0
    %1121 = vmatprep.subr.mxu0 0.0
    %1122 = vmatpush2.msra.mxu0 0.0
    %1123 = vmatprep.subr.mxu0 0.0
    %1124 = vmatpush2.msra.mxu0 0.0
    %1125 = vmatprep.subr.mxu0 0.0
    %1126 = vmatpush2.msra.mxu0 0.0
    %1127 = vmatprep.subr.mxu0 0.0
    %1128 = vmatpush2.msra.mxu0 0.0
    %1129 = vmatprep.subr.mxu0 0.0
    %1130 = vmatpush2.msra.mxu0 0.0
    %1131 = vmatprep.mubr.f32.mxu0 0.0
    %1132 = vmatmul.mubr.f32.gmra.mxu0 %v1065
    %v1133 = vpop.f32.mrf.mxu0
    %v1134 = vadd.f32 0.0, %v1133
    %v1135 = vpop.f32.mrf.mxu0
    %1136 = vdwg.mxu0
    %v1137 = vld [vmem:[#allocation18] sm:$0x1]
    %v1139 = vlaneseq
    %v1140 = vshrl.u32 %v1139, 7
    %v1141 = vsub.s32 0, %v1140
    %v1142 = vrot.slane %v1137, %v1141
    %v1144 = vmul.f32 %v1134, %v1142
    %v1145 = vsel %vm986, %v967, 0
    %1147 = vmatprep.subr.mxu0 0.0
    %1148 = vmatpush1.msra.mxu0 0.0
    %1149 = vmatprep.subr.mxu0 0.0
    %1150 = vmatpush1.msra.mxu0 0.0
    %1151 = vmatprep.subr.mxu0 0.0
    %1152 = vmatpush1.msra.mxu0 0.0
    %1153 = vmatprep.subr.mxu0 0.0
    %1154 = vmatpush1.msra.mxu0 0.0
    %1155 = vmatprep.subr.mxu0 0.0
    %1156 = vmatpush1.msra.mxu0 0.0
    %1157 = vmatprep.subr.mxu0 0.0
    %1158 = vmatpush1.msra.mxu0 0.0
    %1159 = vmatprep.subr.mxu0 0.0
    %1160 = vmatpush1.msra.mxu0 0.0
    %1161 = vmatprep.subr.mxu0 0.0
    %1162 = vmatpush1.msra.mxu0 0.0
    %1163 = vmatprep.subr.mxu0 0.0
    %1164 = vmatpush1.msra.mxu0 0.0
    %1165 = vmatprep.subr.mxu0 0.0
    %1166 = vmatpush1.msra.mxu0 0.0
    %1167 = vmatprep.subr.mxu0 0.0
    %1168 = vmatpush1.msra.mxu0 0.0
    %1169 = vmatprep.subr.mxu0 0.0
    %1170 = vmatpush1.msra.mxu0 0.0
    %1171 = vmatprep.subr.mxu0 0.0
    %1172 = vmatpush1.msra.mxu0 0.0
    %1173 = vmatprep.subr.mxu0 0.0
    %1174 = vmatpush1.msra.mxu0 0.0
    %1175 = vmatprep.subr.mxu0 0.0
    %1176 = vmatpush1.msra.mxu0 0.0
    %1177 = vmatprep.subr.mxu0 0.0
    %1178 = vmatpush1.msra.mxu0 %v990
    %1179 = vmatprep.subr.mxu0 0.0
    %1180 = vmatpush2.msra.mxu0 0.0
    %1181 = vmatprep.subr.mxu0 0.0
    %1182 = vmatpush2.msra.mxu0 0.0
    %1183 = vmatprep.subr.mxu0 0.0
    %1184 = vmatpush2.msra.mxu0 0.0
    %1185 = vmatprep.subr.mxu0 0.0
    %1186 = vmatpush2.msra.mxu0 0.0
    %1187 = vmatprep.subr.mxu0 0.0
    %1188 = vmatpush2.msra.mxu0 0.0
    %1189 = vmatprep.subr.mxu0 0.0
    %1190 = vmatpush2.msra.mxu0 0.0
    %1191 = vmatprep.subr.mxu0 0.0
    %1192 = vmatpush2.msra.mxu0 0.0
    %1193 = vmatprep.subr.mxu0 0.0
    %1194 = vmatpush2.msra.mxu0 0.0
    %1195 = vmatprep.subr.mxu0 0.0
    %1196 = vmatpush2.msra.mxu0 0.0
    %1197 = vmatprep.subr.mxu0 0.0
    %1198 = vmatpush2.msra.mxu0 0.0
    %1199 = vmatprep.subr.mxu0 0.0
    %1200 = vmatpush2.msra.mxu0 0.0
    %1201 = vmatprep.subr.mxu0 0.0
    %1202 = vmatpush2.msra.mxu0 0.0
    %1203 = vmatprep.subr.mxu0 0.0
    %1204 = vmatpush2.msra.mxu0 0.0
    %1205 = vmatprep.subr.mxu0 0.0
    %1206 = vmatpush2.msra.mxu0 0.0
    %1207 = vmatprep.subr.mxu0 0.0
    %1208 = vmatpush2.msra.mxu0 0.0
    %1209 = vmatprep.subr.mxu0 0.0
    %1210 = vmatpush2.msra.mxu0 0.0
    %1211 = vmatprep.mubr.f32.mxu0 0.0
    %1212 = vmatmul.mubr.f32.gmra.mxu0 %v1145
    %v1213 = vpop.f32.mrf.mxu0
    %v1214 = vadd.f32 0.0, %v1213
    %v1215 = vpop.f32.mrf.mxu0
    %1216 = vdwg.mxu0
    %v1217 = vadd.f32 %v1144, %v1214
    %v1218 = vmul.f32 %v1217, 6.2831855
    %v1219 = vand.u32 2147483647, %v1218
    %vm1220 = vcmp.le.f32.partialorder %v1219, 0.7853982
    %vm1221 = vcmp.lt.s32.totalorder %v1218, 0
    %v1222 = vand.u32 %v1218, 2139095040
    %v1223 = vshrl.u32 %v1222, 23
    %v1224 = vsub.s32 %v1223, 127
    %v1225 = vand.u32 2147483647, %v1218
    %v1226 = vand.u32 %v1225, 8388607
    %v1227 = vor.u32 %v1226, 8388608
    %v1228 = vsub.s32 0, %v1227
    %v1229 = vadd.s32 %v1224, 1
    %vm1230 = vcmp.gt.s32.totalorder %v1229, 0
    %v1231 = vsel %vm1230, %v1229, 0
    %v1232 = vshrl.u32 %v1231, 5
    %v1233 = vand.u32 %v1231, 31
    %v1234 = vsub.s32 32, %v1233
    %v1235 = vshrl.u32 683565275, %v1234
    %v1236 = vshll.u32 683565275, %v1233
    %v1237 = vshrl.u32 2475754826, %v1234
    %v1238 = vor.u32 %v1236, %v1237
    %v1239 = vshll.u32 2475754826, %v1233
    %v1240 = vshrl.u32 2131351028, %v1234
    %v1241 = vor.u32 %v1239, %v1240
    %v1242 = vshll.u32 2131351028, %v1233
    %v1243 = vshrl.u32 2102212464, %v1234
    %v1244 = vor.u32 %v1242, %v1243
    %v1245 = vshll.u32 2102212464, %v1233
    %v1246 = vshrl.u32 920167782, %v1234
    %v1247 = vor.u32 %v1245, %v1246
    %v1248 = vshll.u32 920167782, %v1233
    %v1249 = vshrl.u32 1326507024, %v1234
    %v1250 = vor.u32 %v1248, %v1249
    %vm1251 = vcmp.lt.s32.totalorder %v1232, 1
    %vm1252 = vcmp.lt.s32.totalorder %v1232, 2
    %vm1253 = vcmp.lt.s32.totalorder %v1232, 3
    %vm1254 = vcmp.lt.s32.totalorder %v1232, 4
    %v1255 = vsel %vm1251, %v1235, %v1238
    %v1256 = vsel %vm1254, %v1244, 2102212464
    %v1257 = vsel %vm1253, %v1241, %v1256
    %v1258 = vsel %vm1252, %v1255, %v1257
    %v1259 = vsel %vm1251, %v1238, %v1241
    %v1260 = vsel %vm1254, %v1247, 920167782
    %v1261 = vsel %vm1253, %v1244, %v1260
    %v1262 = vsel %vm1252, %v1259, %v1261
    %v1263 = vsel %vm1251, %v1241, %v1244
    %v1264 = vsel %vm1254, %v1250, 1326507024
    %v1265 = vsel %vm1253, %v1247, %v1264
    %v1266 = vsel %vm1252, %v1263, %v1265
    %v1267 = vshll.u32 %v1227, 8
    %v1268 = vmul.u32.u64.compose %v1267, %v1266
    %v1269 = vextract.low.u32 %v1268
    %v1270 = vextract.high.u32 %v1268
    %v1271 = vmul.u32.u64.compose %v1267, %v1262
    %v1272 = vextract.low.u32 %v1271
    %v1273 = vextract.high.u32 %v1271
    %v1274 = vmul.u32 %v1267, %v1258
    %v1275 = vadd.s32 %v1270, %v1272
    %vm1276 = vc.u32 %v1270, %v1272
    %v1277 = vadd.s32 %v1273, 1
    %v1278 = vsel %vm1276, %v1277, %v1273
    %v1279 = vadd.s32 %v1274, %v1278
    %v1280 = vadd.s32 %v1279, 536870912
    %v1281 = vshrl.u32 %v1280, 30
    %v1282 = vshll.u32 %v1281, 30
    %v1283 = vsub.s32 %v1279, %v1282
    %vm1284 = vcmp.lt.s32.totalorder %v1283, 0
    %v1285 = vsub.s32 0, %v1283
    %v1286 = vsel %vm1284, %v1285, %v1283
    %v1287 = vclz %v1286
    %v1288 = vsub.s32 %v1287, 2
    %vm1289 = vcmp.gt.s32.totalorder 0, %v1288
    %v1290 = vsel %vm1289, 0, %v1288
    %v1291 = vsub.s32 32, %v1290
    %v1292 = vshll.u32 %v1283, %v1290
    %v1293 = vshrl.u32 %v1275, %v1291
    %v1294 = vor.u32 %v1292, %v1293
    %v1295 = vsub.s32 4294967266, %v1290
    %v1296 = vadd.s32 %v1295, 127
    %v1297 = vshll.u32 %v1296, 23
    %v1298 = vor.u32 4788187, %v1297
    %v1299 = vand.u32 2147483647, %v1298
    %v1301 = vcvt.s32.f32 %v1294
    %v1302 = vmul.f32 %v1301, %v1299
    %v1303 = vxor.u32 %v1302, 2147483648
    %v1304 = vsel %vm1221, %v1303, %v1302
    %v1305 = vsub.s32 4, %v1281
    %v1306 = vsel %vm1221, %v1305, %v1281
    %v1307 = vsel %vm1220, %v1218, %v1304
    %v1308 = vsel %vm1220, 0, %v1306
    %v1309 = vcosq.f32.pop %v1307
    %v1310 = vsinq.f32.pop %v1307
    %vm1311 = vweird.f32 %v1218
    %v1312 = vadd.s32 %v1308, 3
    %v1313 = vand.u32 %v1312, 3
    %vm1314 = vcmp.lt.s32.totalorder %v1313, 2
    %vm1315 = vcmp.eq.s32.totalorder %v1313, 0
    %v1316 = vxor.u32 %v1310, 2147483648
    %v1317 = vsel %vm1315, %v1309, %v1316
    %vm1318 = vcmp.eq.s32.totalorder %v1313, 2
    %v1319 = vxor.u32 %v1309, 2147483648
    %v1320 = vsel %vm1318, %v1319, %v1310
    %v1321 = vsel %vm1314, %v1317, %v1320
    %v1322 = vsel %vm1311, nan, %v1321
    %v1323 = vmul.f32 %v1059, %v1322
    %1324 = vrot.lane.b32.xlu0 %v902, 120
    %v1325 = vpop.permute.xlu0 %1324
    %v1326 = vsel %vm986, %v1325, 0
    %1328 = vmatprep.subr.mxu0 0.0
    %1329 = vmatpush1.msra.mxu0 0.0
    %1330 = vmatprep.subr.mxu0 0.0
    %1331 = vmatpush1.msra.mxu0 0.0
    %1332 = vmatprep.subr.mxu0 0.0
    %1333 = vmatpush1.msra.mxu0 0.0
    %1334 = vmatprep.subr.mxu0 0.0
    %1335 = vmatpush1.msra.mxu0 0.0
    %1336 = vmatprep.subr.mxu0 0.0
    %1337 = vmatpush1.msra.mxu0 0.0
    %1338 = vmatprep.subr.mxu0 0.0
    %1339 = vmatpush1.msra.mxu0 0.0
    %1340 = vmatprep.subr.mxu0 0.0
    %1341 = vmatpush1.msra.mxu0 0.0
    %1342 = vmatprep.subr.mxu0 0.0
    %1343 = vmatpush1.msra.mxu0 0.0
    %1344 = vmatprep.subr.mxu0 0.0
    %1345 = vmatpush1.msra.mxu0 0.0
    %1346 = vmatprep.subr.mxu0 0.0
    %1347 = vmatpush1.msra.mxu0 0.0
    %1348 = vmatprep.subr.mxu0 0.0
    %1349 = vmatpush1.msra.mxu0 0.0
    %1350 = vmatprep.subr.mxu0 0.0
    %1351 = vmatpush1.msra.mxu0 0.0
    %1352 = vmatprep.subr.mxu0 0.0
    %1353 = vmatpush1.msra.mxu0 0.0
    %1354 = vmatprep.subr.mxu0 0.0
    %1355 = vmatpush1.msra.mxu0 0.0
    %1356 = vmatprep.subr.mxu0 0.0
    %1357 = vmatpush1.msra.mxu0 0.0
    %1358 = vmatprep.subr.mxu0 0.0
    %1359 = vmatpush1.msra.mxu0 %v990
    %1360 = vmatprep.subr.mxu0 0.0
    %1361 = vmatpush2.msra.mxu0 0.0
    %1362 = vmatprep.subr.mxu0 0.0
    %1363 = vmatpush2.msra.mxu0 0.0
    %1364 = vmatprep.subr.mxu0 0.0
    %1365 = vmatpush2.msra.mxu0 0.0
    %1366 = vmatprep.subr.mxu0 0.0
    %1367 = vmatpush2.msra.mxu0 0.0
    %1368 = vmatprep.subr.mxu0 0.0
    %1369 = vmatpush2.msra.mxu0 0.0
    %1370 = vmatprep.subr.mxu0 0.0
    %1371 = vmatpush2.msra.mxu0 0.0
    %1372 = vmatprep.subr.mxu0 0.0
    %1373 = vmatpush2.msra.mxu0 0.0
    %1374 = vmatprep.subr.mxu0 0.0
    %1375 = vmatpush2.msra.mxu0 0.0
    %1376 = vmatprep.subr.mxu0 0.0
    %1377 = vmatpush2.msra.mxu0 0.0
    %1378 = vmatprep.subr.mxu0 0.0
    %1379 = vmatpush2.msra.mxu0 0.0
    %1380 = vmatprep.subr.mxu0 0.0
    %1381 = vmatpush2.msra.mxu0 0.0
    %1382 = vmatprep.subr.mxu0 0.0
    %1383 = vmatpush2.msra.mxu0 0.0
    %1384 = vmatprep.subr.mxu0 0.0
    %1385 = vmatpush2.msra.mxu0 0.0
    %1386 = vmatprep.subr.mxu0 0.0
    %1387 = vmatpush2.msra.mxu0 0.0
    %1388 = vmatprep.subr.mxu0 0.0
    %1389 = vmatpush2.msra.mxu0 0.0
    %1390 = vmatprep.subr.mxu0 0.0
    %1391 = vmatpush2.msra.mxu0 0.0
    %1392 = vmatprep.mubr.f32.mxu0 0.0
    %1393 = vmatmul.mubr.f32.gmra.mxu0 %v1326
    %v1394 = vpop.f32.mrf.mxu0
    %v1395 = vadd.f32 0.0, %v1394
    %v1396 = vpop.f32.mrf.mxu0
    %1397 = vdwg.mxu0
    %v1398 = vadd.f32 %v1323, %v1395
    %1399 = vst.msk [vmem:[%s22] sm:$0x3] %vm642, %v1398
    %v1400 = vld [vmem:[#allocation19] sm:$0xff]
    %v1401 = vld [vmem:[#allocation19 + $0x8] sm:$0xff]
    %v1402 = vld [vmem:[#allocation19 + $0x10] sm:$0xff]
    %v1403 = vld [vmem:[#allocation19 + $0x18] sm:$0xff]
    %v1404 = vld [vmem:[#allocation19 + $0x20] sm:$0xf]
    %v1405 = vld [vmem:[#allocation21] sm:$0x1]
    %v1407 = vlaneseq
    %v1408 = vshrl.u32 %v1407, 7
    %v1409 = vsub.s32 0, %v1408
    %v1410 = vrot.slane %v1405, %v1409
    %v1413 = vsel %vm649, %v1398, 0
    %v1416 = vsel %vm653, %v1404, 0
    %1418 = vmatprep.subr.mxu0 0.0
    %1419 = vmatpush1.msra.mxu0 0.0
    %1420 = vmatprep.subr.mxu0 0.0
    %1421 = vmatpush1.msra.mxu0 0.0
    %1422 = vmatprep.subr.mxu0 0.0
    %1423 = vmatpush1.msra.mxu0 0.0
    %1424 = vmatprep.subr.mxu0 0.0
    %1425 = vmatpush1.msra.mxu0 0.0
    %1426 = vmatprep.subr.mxu0 0.0
    %1427 = vmatpush1.msra.mxu0 0.0
    %1428 = vmatprep.subr.mxu0 0.0
    %1429 = vmatpush1.msra.mxu0 0.0
    %1430 = vmatprep.subr.mxu0 0.0
    %1431 = vmatpush1.msra.mxu0 0.0
    %1432 = vmatprep.subr.mxu0 0.0
    %1433 = vmatpush1.msra.mxu0 0.0
    %1434 = vmatprep.subr.mxu0 0.0
    %1435 = vmatpush1.msra.mxu0 0.0
    %1436 = vmatprep.subr.mxu0 0.0
    %1437 = vmatpush1.msra.mxu0 0.0
    %1438 = vmatprep.subr.mxu0 0.0
    %1439 = vmatpush1.msra.mxu0 0.0
    %1440 = vmatprep.subr.mxu0 0.0
    %1441 = vmatpush1.msra.mxu0 %v1416
    %1442 = vmatprep.subr.mxu0 0.0
    %1443 = vmatpush1.msra.mxu0 %v1403
    %1444 = vmatprep.subr.mxu0 0.0
    %1445 = vmatpush1.msra.mxu0 %v1402
    %1446 = vmatprep.subr.mxu0 0.0
    %1447 = vmatpush1.msra.mxu0 %v1401
    %1448 = vmatprep.subr.mxu0 0.0
    %1449 = vmatpush1.msra.mxu0 %v1400
    %1450 = vmatprep.subr.mxu0 0.0
    %1451 = vmatpush2.msra.mxu0 0.0
    %1452 = vmatprep.subr.mxu0 0.0
    %1453 = vmatpush2.msra.mxu0 0.0
    %1454 = vmatprep.subr.mxu0 0.0
    %1455 = vmatpush2.msra.mxu0 0.0
    %1456 = vmatprep.subr.mxu0 0.0
    %1457 = vmatpush2.msra.mxu0 0.0
    %1458 = vmatprep.subr.mxu0 0.0
    %1459 = vmatpush2.msra.mxu0 0.0
    %1460 = vmatprep.subr.mxu0 0.0
    %1461 = vmatpush2.msra.mxu0 0.0
    %1462 = vmatprep.subr.mxu0 0.0
    %1463 = vmatpush2.msra.mxu0 0.0
    %1464 = vmatprep.subr.mxu0 0.0
    %1465 = vmatpush2.msra.mxu0 0.0
    %1466 = vmatprep.subr.mxu0 0.0
    %1467 = vmatpush2.msra.mxu0 0.0
    %1468 = vmatprep.subr.mxu0 0.0
    %1469 = vmatpush2.msra.mxu0 0.0
    %1470 = vmatprep.subr.mxu0 0.0
    %1471 = vmatpush2.msra.mxu0 0.0
    %1472 = vmatprep.subr.mxu0 0.0
    %1473 = vmatpush2.msra.mxu0 0.0
    %1474 = vmatprep.subr.mxu0 0.0
    %1475 = vmatpush2.msra.mxu0 0.0
    %1476 = vmatprep.subr.mxu0 0.0
    %1477 = vmatpush2.msra.mxu0 0.0
    %1478 = vmatprep.subr.mxu0 0.0
    %1479 = vmatpush2.msra.mxu0 0.0
    %1480 = vmatprep.subr.mxu0 0.0
    %1481 = vmatpush2.msra.mxu0 0.0
    %1482 = vmatprep.mubr.f32.mxu0 0.0
    %1483 = vmatmul.mubr.f32.gmra.mxu0 %v1413
    %v1484 = vpop.f32.mrf.mxu0
    %v1485 = vadd.f32 %v1410, %v1484
    %v1486 = vpop.f32.mrf.mxu0
    %1487 = vdwg.mxu0
    %v1488 = vld [vmem:[#allocation22] sm:$0x1]
    %v1489 = vld [vmem:[#allocation24] sm:$0x1]
    %v1490 = vld [vmem:[%s3] sm:$0xff]
    %v1491 = vld [vmem:[%s3 + $0x8] sm:$0xff]
    %v1492 = vld [vmem:[%s3 + $0x10] sm:$0x3]
    %v1494 = vsel %vm375, %v1485, 0
    %v1497 = vsel %vm379, %v1492, 0
    %1499 = vmatprep.subr.mxu0 0.0
    %1500 = vmatpush1.msra.mxu0 0.0
    %1501 = vmatprep.subr.mxu0 0.0
    %1502 = vmatpush1.msra.mxu0 0.0
    %1503 = vmatprep.subr.mxu0 0.0
    %1504 = vmatpush1.msra.mxu0 0.0
    %1505 = vmatprep.subr.mxu0 0.0
    %1506 = vmatpush1.msra.mxu0 0.0
    %1507 = vmatprep.subr.mxu0 0.0
    %1508 = vmatpush1.msra.mxu0 0.0
    %1509 = vmatprep.subr.mxu0 0.0
    %1510 = vmatpush1.msra.mxu0 0.0
    %1511 = vmatprep.subr.mxu0 0.0
    %1512 = vmatpush1.msra.mxu0 0.0
    %1513 = vmatprep.subr.mxu0 0.0
    %1514 = vmatpush1.msra.mxu0 0.0
    %1515 = vmatprep.subr.mxu0 0.0
    %1516 = vmatpush1.msra.mxu0 0.0
    %1517 = vmatprep.subr.mxu0 0.0
    %1518 = vmatpush1.msra.mxu0 0.0
    %1519 = vmatprep.subr.mxu0 0.0
    %1520 = vmatpush1.msra.mxu0 0.0
    %1521 = vmatprep.subr.mxu0 0.0
    %1522 = vmatpush1.msra.mxu0 0.0
    %1523 = vmatprep.subr.mxu0 0.0
    %1524 = vmatpush1.msra.mxu0 0.0
    %1525 = vmatprep.subr.mxu0 0.0
    %1526 = vmatpush1.msra.mxu0 %v1497
    %1527 = vmatprep.subr.mxu0 0.0
    %1528 = vmatpush1.msra.mxu0 %v1491
    %1529 = vmatprep.subr.mxu0 0.0
    %1530 = vmatpush1.msra.mxu0 %v1490
    %1531 = vmatprep.subr.mxu0 0.0
    %1532 = vmatpush2.msra.mxu0 0.0
    %1533 = vmatprep.subr.mxu0 0.0
    %1534 = vmatpush2.msra.mxu0 0.0
    %1535 = vmatprep.subr.mxu0 0.0
    %1536 = vmatpush2.msra.mxu0 0.0
    %1537 = vmatprep.subr.mxu0 0.0
    %1538 = vmatpush2.msra.mxu0 0.0
    %1539 = vmatprep.subr.mxu0 0.0
    %1540 = vmatpush2.msra.mxu0 0.0
    %1541 = vmatprep.subr.mxu0 0.0
    %1542 = vmatpush2.msra.mxu0 0.0
    %1543 = vmatprep.subr.mxu0 0.0
    %1544 = vmatpush2.msra.mxu0 0.0
    %1545 = vmatprep.subr.mxu0 0.0
    %1546 = vmatpush2.msra.mxu0 0.0
    %1547 = vmatprep.subr.mxu0 0.0
    %1548 = vmatpush2.msra.mxu0 0.0
    %1549 = vmatprep.subr.mxu0 0.0
    %1550 = vmatpush2.msra.mxu0 0.0
    %1551 = vmatprep.subr.mxu0 0.0
    %1552 = vmatpush2.msra.mxu0 0.0
    %1553 = vmatprep.subr.mxu0 0.0
    %1554 = vmatpush2.msra.mxu0 0.0
    %1555 = vmatprep.subr.mxu0 0.0
    %1556 = vmatpush2.msra.mxu0 0.0
    %1557 = vmatprep.subr.mxu0 0.0
    %1558 = vmatpush2.msra.mxu0 0.0
    %1559 = vmatprep.subr.mxu0 0.0
    %1560 = vmatpush2.msra.mxu0 0.0
    %1561 = vmatprep.subr.mxu0 0.0
    %1562 = vmatpush2.msra.mxu0 0.0
    %1563 = vmatprep.mubr.f32.mxu0 0.0
    %1564 = vmatmul.mubr.f32.gmra.mxu0 %v1494
    %v1565 = vpop.f32.mrf.mxu0
    %v1566 = vadd.f32 0.0, %v1565
    %v1567 = vpop.f32.mrf.mxu0
    %1568 = vdwg.mxu0
    %v1569 = vsub.f32 %v1485, %v1566
    %v1570 = vmul.f32 %v1569, %v1569
    %v1572 = vsel %vm375, %v1570, 0
    %1574 = vmatprep.subr.mxu0 0.0
    %1575 = vmatpush1.msra.mxu0 0.0
    %1576 = vmatprep.subr.mxu0 0.0
    %1577 = vmatpush1.msra.mxu0 0.0
    %1578 = vmatprep.subr.mxu0 0.0
    %1579 = vmatpush1.msra.mxu0 0.0
    %1580 = vmatprep.subr.mxu0 0.0
    %1581 = vmatpush1.msra.mxu0 0.0
    %1582 = vmatprep.subr.mxu0 0.0
    %1583 = vmatpush1.msra.mxu0 0.0
    %1584 = vmatprep.subr.mxu0 0.0
    %1585 = vmatpush1.msra.mxu0 0.0
    %1586 = vmatprep.subr.mxu0 0.0
    %1587 = vmatpush1.msra.mxu0 0.0
    %1588 = vmatprep.subr.mxu0 0.0
    %1589 = vmatpush1.msra.mxu0 0.0
    %1590 = vmatprep.subr.mxu0 0.0
    %1591 = vmatpush1.msra.mxu0 0.0
    %1592 = vmatprep.subr.mxu0 0.0
    %1593 = vmatpush1.msra.mxu0 0.0
    %1594 = vmatprep.subr.mxu0 0.0
    %1595 = vmatpush1.msra.mxu0 0.0
    %1596 = vmatprep.subr.mxu0 0.0
    %1597 = vmatpush1.msra.mxu0 0.0
    %1598 = vmatprep.subr.mxu0 0.0
    %1599 = vmatpush1.msra.mxu0 0.0
    %1600 = vmatprep.subr.mxu0 0.0
    %1601 = vmatpush1.msra.mxu0 %v1497
    %1602 = vmatprep.subr.mxu0 0.0
    %1603 = vmatpush1.msra.mxu0 %v1491
    %1604 = vmatprep.subr.mxu0 0.0
    %1605 = vmatpush1.msra.mxu0 %v1490
    %1606 = vmatprep.subr.mxu0 0.0
    %1607 = vmatpush2.msra.mxu0 0.0
    %1608 = vmatprep.subr.mxu0 0.0
    %1609 = vmatpush2.msra.mxu0 0.0
    %1610 = vmatprep.subr.mxu0 0.0
    %1611 = vmatpush2.msra.mxu0 0.0
    %1612 = vmatprep.subr.mxu0 0.0
    %1613 = vmatpush2.msra.mxu0 0.0
    %1614 = vmatprep.subr.mxu0 0.0
    %1615 = vmatpush2.msra.mxu0 0.0
    %1616 = vmatprep.subr.mxu0 0.0
    %1617 = vmatpush2.msra.mxu0 0.0
    %1618 = vmatprep.subr.mxu0 0.0
    %1619 = vmatpush2.msra.mxu0 0.0
    %1620 = vmatprep.subr.mxu0 0.0
    %1621 = vmatpush2.msra.mxu0 0.0
    %1622 = vmatprep.subr.mxu0 0.0
    %1623 = vmatpush2.msra.mxu0 0.0
    %1624 = vmatprep.subr.mxu0 0.0
    %1625 = vmatpush2.msra.mxu0 0.0
    %1626 = vmatprep.subr.mxu0 0.0
    %1627 = vmatpush2.msra.mxu0 0.0
    %1628 = vmatprep.subr.mxu0 0.0
    %1629 = vmatpush2.msra.mxu0 0.0
    %1630 = vmatprep.subr.mxu0 0.0
    %1631 = vmatpush2.msra.mxu0 0.0
    %1632 = vmatprep.subr.mxu0 0.0
    %1633 = vmatpush2.msra.mxu0 0.0
    %1634 = vmatprep.subr.mxu0 0.0
    %1635 = vmatpush2.msra.mxu0 0.0
    %1636 = vmatprep.subr.mxu0 0.0
    %1637 = vmatpush2.msra.mxu0 0.0
    %1638 = vmatprep.mubr.f32.mxu0 0.0
    %1639 = vmatmul.mubr.f32.gmra.mxu0 %v1572
    %v1640 = vpop.f32.mrf.mxu0
    %v1641 = vadd.f32 1e-05, %v1640
    %v1642 = vpop.f32.mrf.mxu0
    %1643 = vdwg.mxu0
    %v1644 = vrsqrt.pop %v1641
    %v1645 = vmul.f32 %v1641, %v1644
    %vm1646 = vcmp.eq.f32.partialorder %v1641, inf
    %v1647 = vsel %vm1646, %v1641, %v1645
    %vm1648 = vcmp.eq.f32.partialorder %v1641, 0.0
    %v1649 = vand.u32 %v1641, 2147483648
    %v1650 = vsel %vm1648, %v1649, %v1647
    %v1651 = vrcp.pop %v1650
    %v1652 = vmul.f32 %v1569, %v1651
    %v1654 = vlaneseq
    %v1655 = vshrl.u32 %v1654, 7
    %v1656 = vsub.s32 0, %v1655
    %v1657 = vrot.slane %v1488, %v1656
    %v1659 = vmul.f32 %v1652, %v1657
    %v1661 = vlaneseq
    %v1662 = vshrl.u32 %v1661, 7
    %v1663 = vsub.s32 0, %v1662
    %v1664 = vrot.slane %v1489, %v1663
    %v1666 = vadd.f32 %v1659, %v1664
    %vm1667 = vcmp.gt.f32.partialorder %v1666, 0.0
    %v1668 = vmul.f32 %v1666, 1.442695
    %v1669 = vpow.pop %v1668
    %v1670 = vsub.f32 %v1669, 1.0
    %v1671 = vsel %vm1667, %v1666, %v1670
    %v1672 = vld [vmem:[#allocation25] sm:$0xff]
    %v1673 = vld [vmem:[#allocation25 + $0x8] sm:$0xff]
    %v1674 = vld [vmem:[#allocation25 + $0x10] sm:$0x3]
    %v1675 = vld [vmem:[#allocation27] sm:$0x1]
    %v1677 = vlaneseq
    %v1678 = vshrl.u32 %v1677, 7
    %v1679 = vsub.s32 0, %v1678
    %v1680 = vrot.slane %v1675, %v1679
    %v1683 = vsel %vm375, %v1671, 0
    %v1686 = vsel %vm379, %v1674, 0
    %1688 = vmatprep.subr.mxu0 0.0
    %1689 = vmatpush1.msra.mxu0 0.0
    %1690 = vmatprep.subr.mxu0 0.0
    %1691 = vmatpush1.msra.mxu0 0.0
    %1692 = vmatprep.subr.mxu0 0.0
    %1693 = vmatpush1.msra.mxu0 0.0
    %1694 = vmatprep.subr.mxu0 0.0
    %1695 = vmatpush1.msra.mxu0 0.0
    %1696 = vmatprep.subr.mxu0 0.0
    %1697 = vmatpush1.msra.mxu0 0.0
    %1698 = vmatprep.subr.mxu0 0.0
    %1699 = vmatpush1.msra.mxu0 0.0
    %1700 = vmatprep.subr.mxu0 0.0
    %1701 = vmatpush1.msra.mxu0 0.0
    %1702 = vmatprep.subr.mxu0 0.0
    %1703 = vmatpush1.msra.mxu0 0.0
    %1704 = vmatprep.subr.mxu0 0.0
    %1705 = vmatpush1.msra.mxu0 0.0
    %1706 = vmatprep.subr.mxu0 0.0
    %1707 = vmatpush1.msra.mxu0 0.0
    %1708 = vmatprep.subr.mxu0 0.0
    %1709 = vmatpush1.msra.mxu0 0.0
    %1710 = vmatprep.subr.mxu0 0.0
    %1711 = vmatpush1.msra.mxu0 0.0
    %1712 = vmatprep.subr.mxu0 0.0
    %1713 = vmatpush1.msra.mxu0 0.0
    %1714 = vmatprep.subr.mxu0 0.0
    %1715 = vmatpush1.msra.mxu0 %v1686
    %1716 = vmatprep.subr.mxu0 0.0
    %1717 = vmatpush1.msra.mxu0 %v1673
    %1718 = vmatprep.subr.mxu0 0.0
    %1719 = vmatpush1.msra.mxu0 %v1672
    %1720 = vmatprep.subr.mxu0 0.0
    %1721 = vmatpush2.msra.mxu0 0.0
    %1722 = vmatprep.subr.mxu0 0.0
    %1723 = vmatpush2.msra.mxu0 0.0
    %1724 = vmatprep.subr.mxu0 0.0
    %1725 = vmatpush2.msra.mxu0 0.0
    %1726 = vmatprep.subr.mxu0 0.0
    %1727 = vmatpush2.msra.mxu0 0.0
    %1728 = vmatprep.subr.mxu0 0.0
    %1729 = vmatpush2.msra.mxu0 0.0
    %1730 = vmatprep.subr.mxu0 0.0
    %1731 = vmatpush2.msra.mxu0 0.0
    %1732 = vmatprep.subr.mxu0 0.0
    %1733 = vmatpush2.msra.mxu0 0.0
    %1734 = vmatprep.subr.mxu0 0.0
    %1735 = vmatpush2.msra.mxu0 0.0
    %1736 = vmatprep.subr.mxu0 0.0
    %1737 = vmatpush2.msra.mxu0 0.0
    %1738 = vmatprep.subr.mxu0 0.0
    %1739 = vmatpush2.msra.mxu0 0.0
    %1740 = vmatprep.subr.mxu0 0.0
    %1741 = vmatpush2.msra.mxu0 0.0
    %1742 = vmatprep.subr.mxu0 0.0
    %1743 = vmatpush2.msra.mxu0 0.0
    %1744 = vmatprep.subr.mxu0 0.0
    %1745 = vmatpush2.msra.mxu0 0.0
    %1746 = vmatprep.subr.mxu0 0.0
    %1747 = vmatpush2.msra.mxu0 0.0
    %1748 = vmatprep.subr.mxu0 0.0
    %1749 = vmatpush2.msra.mxu0 0.0
    %1750 = vmatprep.subr.mxu0 0.0
    %1751 = vmatpush2.msra.mxu0 0.0
    %1752 = vmatprep.mubr.f32.mxu0 0.0
    %1753 = vmatmul.mubr.f32.gmra.mxu0 %v1683
    %v1754 = vpop.f32.mrf.mxu0
    %v1755 = vadd.f32 %v1680, %v1754
    %v1756 = vpop.f32.mrf.mxu0
    %1757 = vdwg.mxu0
    %vm1758 = vcmask 435200
    %1759 = vst.msk [vmem:[%s20] sm:$0x3] %vm1758, %v1755
    // Predicated region
    $region150: #{_lambda_.1} parent=1 // pred_check
      _
    $region151: #{_lambda_.1} parent=1 // pred_check_branch
      %1761 = sbr.rel (0) target = $region153
    $region152: #{_lambda_.1} parent=1 // pred_region
      _
    $region153: #{_lambda_.1} parent=1 // pred_fallthru
      _
    // Predicated region
    $region154: #{_lambda_.1} parent=1 // pred_check
      _
    $region155: #{_lambda_.1} parent=1 // pred_check_branch
      %1763 = sbr.rel (0) target = $region157
    $region156: #{_lambda_.1} parent=1 // pred_region
      _
    $region157: #{_lambda_.1} parent=1 // pred_fallthru
      _
    // Predicated region
    $region158: #{_lambda_.1} parent=1 // pred_check
      _
    $region159: #{_lambda_.1} parent=1 // pred_check_branch
      %1765 = sbr.rel (0) target = $region161
    $region160: #{_lambda_.1} parent=1 // pred_region
      _
    $region161: #{_lambda_.1} parent=1 // pred_fallthru
      _
    // Predicated region
    $region162: #{_lambda_.1} parent=1 // pred_check
      _
    $region163: #{_lambda_.1} parent=1 // pred_check_branch
      %1767 = sbr.rel (0) target = $region165
    $region164: #{_lambda_.1} parent=1 // pred_region
      _
    $region165: #{_lambda_.1} parent=1 // pred_fallthru
      _
    // Predicated region
    $region166: #{_lambda_.1} parent=1 // pred_check
      _
    $region167: #{_lambda_.1} parent=1 // pred_check_branch
      %1769 = sbr.rel (0) target = $region169
    $region168: #{_lambda_.1} parent=1 // pred_region
      _
    $region169: #{_lambda_.1} parent=1 // pred_fallthru
      _
    // Predicated region
    $region170: #{_lambda_.1} parent=1 // pred_check
      _
    $region171: #{_lambda_.1} parent=1 // pred_check_branch
      %1771 = sbr.rel (0) target = $region173
    $region172: #{_lambda_.1} parent=1 // pred_region
      _
    $region173: #{_lambda_.1} parent=1 // pred_fallthru
      _
    // Predicated region
    $region174: #{_lambda_.1} parent=1 // pred_check
      _
    $region175: #{_lambda_.1} parent=1 // pred_check_branch
      %1773 = sbr.rel (0) target = $region177
    $region176: #{_lambda_.1} parent=1 // pred_region
      _
    $region177: #{_lambda_.1} parent=1 // pred_fallthru
      _
    // Predicated region
    $region178: #{_lambda_.1} parent=1 // pred_check
      _
    $region179: #{_lambda_.1} parent=1 // pred_check_branch
      %1775 = sbr.rel (0) target = $region181
    $region180: #{_lambda_.1} parent=1 // pred_region
      _
    $region181: #{_lambda_.1} parent=1 // pred_fallthru
      _
    %1776 = vsyncpa [#allocation3], 1
    %1777 = vsyncpa [#allocation5], 1
    %1778 = vsyncpa [#allocation8], 1
    %1779 = vsyncpa [#allocation11], 1
    %1780 = vsyncpa [#allocation14], 1
    %1781 = vsyncpa [#allocation17], 1
    %1782 = vsyncpa [#allocation20], 1
    %1783 = vsyncpa [#allocation23], 1
    %1784 = vsyncpa [#allocation26], 1

</llo_original>
